<compile_context>
chip_gen: v6e
topology: v6e:2x2x1
jax: 0.10.0
libtpu: 0.0.40
codegen_flags: <defaults>
</compile_context>

<pallas_src>
import jax
import jax.numpy as jnp
from jax.experimental import pallas as pl
from jax.experimental.pallas import tpu as pltpu

# --- hyperparameters (mirroring Heart_PT_generate.py) ---
N_EMBD = 64
N_HEAD = 8
HEAD_SIZE = N_EMBD // N_HEAD
N_LAYER = 8
BLOCK_SIZE = 500          # max context length (positional table size)
VOCAB_SIZE = 101
VOCAB_PAD = 128           # lane-dense padded vocab for the lm_head output
QKV_STRIDE = 128          # q/k/v each start on a 128-lane boundary in wqkv
LN_EPS = 1e-5             # PyTorch nn.LayerNorm default eps


def _layernorm(h, g, b):
    mu = jnp.mean(h, axis=-1, keepdims=True)
    var = jnp.mean(jnp.square(h - mu), axis=-1, keepdims=True)   # biased, like torch
    return (h - mu) * jax.lax.rsqrt(var + LN_EPS) * g + b


def _model_kernel(x_ref, vecs_ref, wqkv_ref, wproj_ref, w1_ref, w2_ref,
                  fvec_ref, wlm_ref, o_ref, x_sc):
    """One batch row: all N_LAYER Blocks + ln_f + lm_head; weights VMEM-resident."""
    T, C = x_sc.shape
    hs = HEAD_SIZE

    # Causal additive bias, built ONCE per program (layer loop is inside).
    row = jax.lax.broadcasted_iota(jnp.int32, (T, T), 0)
    col = jax.lax.broadcasted_iota(jnp.int32, (T, T), 1)
    mask_bias = jnp.where(col <= row, jnp.float32(0.0), jnp.float32(-1e30))

    x_sc[...] = x_ref[...].astype(jnp.float32)

    def layer_body(l, carry):
        x = x_sc[...]                                   # (T, C) f32 residual
        vecs = vecs_ref[l]                              # (8, 4C) packed small params
        ln1_g, ln1_b = vecs[0:1, :C], vecs[1:2, :C]
        bproj = vecs[2:3, :C]
        ln2_g, ln2_b = vecs[3:4, :C], vecs[4:5, :C]
        b2 = vecs[5:6, :C]
        b1 = vecs[6:7, :]                               # (1, 4C)

        # ---- multi-head causal self-attention on ln1(x) ----
        h = _layernorm(x, ln1_g, ln1_b).astype(jnp.bfloat16)
        qkv = jnp.dot(h, wqkv_ref[l],                   # bf16 weight, (T, 384)
                      preferred_element_type=jnp.float32)
        q = qkv[:, 0:C].astype(jnp.bfloat16)            # scale already folded in
        k = qkv[:, QKV_STRIDE:QKV_STRIDE + C].astype(jnp.bfloat16)
        v = qkv[:, 2 * QKV_STRIDE:2 * QKV_STRIDE + C].astype(jnp.bfloat16)

        head_outs = []
        for hh in range(N_HEAD):                        # static unroll, hs = 8
            sl = slice(hh * hs, (hh + 1) * hs)
            wei = jax.lax.dot_general(q[:, sl], k[:, sl],
                                      (((1,), (1,)), ((), ())),
                                      preferred_element_type=jnp.float32)
            wei = wei + mask_bias
            m = jnp.max(wei, axis=-1, keepdims=True)
            e = jnp.exp(wei - m)
            inv = pl.reciprocal(jnp.sum(e, axis=-1, keepdims=True), approx=True)
            p = (e * inv).astype(jnp.bfloat16)          # softmax probs
            head_outs.append(jnp.dot(p, v[:, sl],
                                     preferred_element_type=jnp.float32))
        sa = jnp.concatenate(head_outs, axis=-1)        # (T, C) f32
        sa = jnp.dot(sa.astype(jnp.bfloat16), wproj_ref[l],
                     preferred_element_type=jnp.float32) + bproj
        x = x + sa

        # ---- feed-forward on ln2(x) ----
        h2 = _layernorm(x, ln2_g, ln2_b).astype(jnp.bfloat16)
        ff = jnp.dot(h2, w1_ref[l], preferred_element_type=jnp.float32) + b1
        ff = jnp.maximum(ff, 0.0).astype(jnp.bfloat16)  # ReLU
        ff = jnp.dot(ff, w2_ref[l], preferred_element_type=jnp.float32) + b2
        x_sc[...] = x + ff
        return carry

    jax.lax.fori_loop(0, N_LAYER, layer_body, 0)

    # ---- ln_f + lm_head fused (lane-dense 128-wide padded logits) ----
    x = x_sc[...]
    fvec = fvec_ref[...]                                # (8, 128) f32
    lnf_g, lnf_b, blm = fvec[0:1, :C], fvec[1:2, :C], fvec[2:3, :]
    hf = _layernorm(x, lnf_g, lnf_b).astype(jnp.bfloat16)
    logits = jnp.dot(hf, wlm_ref[...], preferred_element_type=jnp.float32) + blm
    o_ref[...] = logits.astype(o_ref.dtype)


def heart_gpt_pallas(x, p):
    """Single fused pallas_call: grid over batch ('parallel'), weights resident."""
    B, T_pad, C = x.shape
    L = N_LAYER
    const3 = lambda b: (0, 0, 0)
    const2 = lambda b: (0, 0)
    batch3 = lambda b: (b, 0, 0)

    grid_spec = pltpu.PrefetchScalarGridSpec(
        num_scalar_prefetch=0,
        grid=(B,),
        in_specs=[
            pl.BlockSpec((None, T_pad, C), batch3),           # x (per-batch block)
            pl.BlockSpec((L, 8, 4 * C), const3),              # packed per-layer vectors
            pl.BlockSpec((L, C, 3 * QKV_STRIDE), const3),     # wqkv bf16 (Q-scaled, aligned)
            pl.BlockSpec((L, C, C), const3),                  # wproj bf16
            pl.BlockSpec((L, C, 4 * C), const3),              # w1 bf16
            pl.BlockSpec((L, 4 * C, C), const3),              # w2 bf16
            pl.BlockSpec((8, VOCAB_PAD), const2),             # ln_f gamma/beta + lm bias
            pl.BlockSpec((C, VOCAB_PAD), const2),             # wlm bf16 (lane-dense)
        ],
        out_specs=pl.BlockSpec((None, T_pad, VOCAB_PAD), batch3),
        scratch_shapes=[pltpu.VMEM((T_pad, C), jnp.float32)],
    )
    return pl.pallas_call(
        _model_kernel,
        out_shape=jax.ShapeDtypeStruct((B, T_pad, VOCAB_PAD), jnp.float32),
        grid_spec=grid_spec,
        compiler_params=pltpu.CompilerParams(
            dimension_semantics=("parallel",),
            vmem_limit_bytes=32 * 1024 * 1024),
    )(x, p['vecs'], p['wqkv'], p['wproj'], p['w1'], p['w2'], p['fvec'], p['wlm'])


def init_params(key):
    keys = jax.random.split(key, 9)
    C, L = N_EMBD, N_LAYER

    def dense(k, shape):
        return jax.random.normal(k, shape, jnp.float32) * 0.02

    scale = float(N_EMBD) ** -0.5        # scaled by n_embd, exactly as Head.forward

    # Fused QKV weight: Q columns pre-scaled; each of Q/K/V starts at a 128-lane
    # boundary (columns 0 / 128 / 256), padding columns are zero.
    wq = dense(keys[0], (L, C, C)) * scale
    wk = dense(keys[1], (L, C, C))
    wv = dense(keys[2], (L, C, C))
    wqkv = jnp.zeros((L, C, 3 * QKV_STRIDE), jnp.float32)
    wqkv = (wqkv.at[:, :, 0:C].set(wq)
                 .at[:, :, QKV_STRIDE:QKV_STRIDE + C].set(wk)
                 .at[:, :, 2 * QKV_STRIDE:2 * QKV_STRIDE + C].set(wv))

    # Packed small per-layer params, rows: [ln1_g, ln1_b, bproj, ln2_g, ln2_b, b2, b1, pad]
    vecs = jnp.zeros((L, 8, 4 * C), jnp.float32)
    vecs = vecs.at[:, 0, :C].set(1.0)    # ln1 gamma
    vecs = vecs.at[:, 3, :C].set(1.0)    # ln2 gamma
    # betas / linear biases zero-init

    # lm_head padded to lane-dense 128 columns (extra columns are zero).
    wlm = dense(keys[3], (C, VOCAB_SIZE))
    wlm_pad = jnp.zeros((C, VOCAB_PAD), jnp.float32).at[:, :VOCAB_SIZE].set(wlm)

    # ln_f gamma / beta / lm bias packed into one (8, 128) array.
    fvec = jnp.zeros((8, VOCAB_PAD), jnp.float32)
    fvec = fvec.at[0, :C].set(1.0)       # ln_f gamma (row1 = beta, row2 = lm bias)

    return {
        'tok_emb': dense(keys[4], (VOCAB_SIZE, C)),
        'pos_emb': dense(keys[5], (BLOCK_SIZE, C)),
        'vecs': vecs,
        'wqkv': wqkv.astype(jnp.bfloat16),
        'wproj': dense(keys[6], (L, C, C)).astype(jnp.bfloat16),
        'w1': dense(keys[7], (L, C, 4 * C)).astype(jnp.bfloat16),
        'w2': dense(keys[8], (L, 4 * C, C)).astype(jnp.bfloat16),
        'wlm': wlm_pad.astype(jnp.bfloat16),
        'fvec': fvec,
    }


def heart_gpt_forward(params, idx):
    """Equivalent of Heart_GPT_Model.forward(idx) with targets=None -> logits."""
    B, T = idx.shape
    if T > BLOCK_SIZE:
        raise ValueError("sequence length exceeds block_size")
    # Pad T to a multiple of 8 (sublane-aligned). Causal masking keeps padded key
    # columns inert for real rows; padded query rows are sliced off below.
    T_pad = ((T + 7) // 8) * 8
    tok_emb = jnp.take(params['tok_emb'], idx, axis=0)        # (B, T, C) gather (XLA glue)
    if T_pad != T:
        tok_emb = jnp.pad(tok_emb, ((0, 0), (0, T_pad - T), (0, 0)))
    pos = jnp.minimum(jnp.arange(T_pad), BLOCK_SIZE - 1)
    pos_emb = jnp.take(params['pos_emb'], pos, axis=0)        # (T_pad, C)
    x = tok_emb + pos_emb[None, :, :]
    logits = heart_gpt_pallas(x, params)                      # (B, T_pad, 128)
    # TODO(synk): at the full T=500 config, tile attention over query blocks
    # (flash-style online softmax, T padded to 512) to bound (T,T) score memory.
    return logits[:, :T, :VOCAB_SIZE]                         # drop padding


if __name__ == "__main__":
    key = jax.random.PRNGKey(0)
    pkey, ikey = jax.random.split(key)
    params = init_params(pkey)

    B, T = 2, 16
    idx = jax.random.randint(ikey, (B, T), 0, VOCAB_SIZE, dtype=jnp.int32)

    forward = jax.jit(heart_gpt_forward)
    logits = jax.block_until_ready(forward(params, idx))

    assert logits.shape == (B, T, VOCAB_SIZE), logits.shape
    assert bool(jnp.all(jnp.isfinite(logits)))
    print("KERNEL_OK")
</pallas_src>

<mosaic_0001>
module attributes {stable_mosaic.version = 11 : i64} {
  func.func @_model_kernel(%arg0: i32, %arg1: memref<1x16x64xf32, #tpu.memory_space<vmem>>, %arg2: memref<8x8x256xf32, #tpu.memory_space<vmem>>, %arg3: memref<8x64x384xbf16, #tpu.memory_space<vmem>>, %arg4: memref<8x64x64xbf16, #tpu.memory_space<vmem>>, %arg5: memref<8x64x256xbf16, #tpu.memory_space<vmem>>, %arg6: memref<8x256x64xbf16, #tpu.memory_space<vmem>>, %arg7: memref<8x128xf32, #tpu.memory_space<vmem>>, %arg8: memref<64x128xbf16, #tpu.memory_space<vmem>>, %arg9: memref<1x16x128xf32, #tpu.memory_space<vmem>>, %arg10: memref<16x64xf32, #tpu.memory_space<vmem>>) attributes {dimension_semantics = [#tpu.dimension_semantics<parallel>], iteration_bounds = array<i64: 2>, scalar_prefetch = 0 : i64, scratch_operands = 1 : i64, tpu.core_type = #tpu.core_type<tc>, window_params = [{transform_indices = @transform_0, window_bounds = array<i64: 1, 16, 64>}, {pipeline_mode = #tpu.pipeline_mode<synchronous>, transform_indices = @transform_1, window_bounds = array<i64: 8, 8, 256>}, {pipeline_mode = #tpu.pipeline_mode<synchronous>, transform_indices = @transform_2, window_bounds = array<i64: 8, 64, 384>}, {pipeline_mode = #tpu.pipeline_mode<synchronous>, transform_indices = @transform_3, window_bounds = array<i64: 8, 64, 64>}, {pipeline_mode = #tpu.pipeline_mode<synchronous>, transform_indices = @transform_4, window_bounds = array<i64: 8, 64, 256>}, {pipeline_mode = #tpu.pipeline_mode<synchronous>, transform_indices = @transform_5, window_bounds = array<i64: 8, 256, 64>}, {pipeline_mode = #tpu.pipeline_mode<synchronous>, transform_indices = @transform_6, window_bounds = array<i64: 8, 128>}, {pipeline_mode = #tpu.pipeline_mode<synchronous>, transform_indices = @transform_7, window_bounds = array<i64: 64, 128>}, {transform_indices = @transform_8, window_bounds = array<i64: 1, 16, 128>}]} {
    %0 = tpu.iota {dimensions = array<i32: 0>} : vector<16x16xi32>
    %1 = tpu.iota {dimensions = array<i32: 1>} : vector<16x16xi32>
    %2 = arith.cmpi sle, %1, %0 : vector<16x16xi32>
    %cst = arith.constant 0.000000e+00 : f32
    %cst_0 = arith.constant -1.000000e+30 : f32
    %3 = vector.broadcast %cst : f32 to vector<16x16xf32>
    %4 = vector.broadcast %cst_0 : f32 to vector<16x16xf32>
    %5 = arith.select %2, %3, %4 : vector<16x16xi1>, vector<16x16xf32>
    %c0 = arith.constant 0 : index
    %c0_1 = arith.constant 0 : index
    %c0_2 = arith.constant 0 : index
    %6 = vector.load %arg1[%c0, %c0_1, %c0_2] : memref<1x16x64xf32, #tpu.memory_space<vmem>>, vector<1x16x64xf32>
    %7 = vector.shape_cast %6 : vector<1x16x64xf32> to vector<16x64xf32>
    %c0_3 = arith.constant 0 : index
    %c0_4 = arith.constant 0 : index
    %8 = vector.load %arg10[%c0_3, %c0_4] : memref<16x64xf32, #tpu.memory_space<vmem>>, vector<16x64xf32>
    tpu.vector_store %arg10[%c0_3, %c0_4], %7 {strides = array<i32>} : memref<16x64xf32, #tpu.memory_space<vmem>>, vector<16x64xf32>,
    %c0_i32 = arith.constant 0 : i32
    %c8_i32 = arith.constant 8 : i32
    %9 = arith.addi %c0_i32, %c8_i32 : i32
    %c1_i32 = arith.constant 1 : i32
    scf.for %arg11 = %c0_i32 to %9 step %c1_i32  : i32 {
      %c0_21 = arith.constant 0 : index
      %c0_22 = arith.constant 0 : index
      %45 = vector.load %arg10[%c0_21, %c0_22] : memref<16x64xf32, #tpu.memory_space<vmem>>, vector<16x64xf32>
      %46 = arith.index_cast %arg11 : i32 to index
      %c0_23 = arith.constant 0 : index
      %c0_24 = arith.constant 0 : index
      %47 = vector.load %arg2[%46, %c0_23, %c0_24] : memref<8x8x256xf32, #tpu.memory_space<vmem>>, vector<1x8x256xf32>
      %48 = vector.shape_cast %47 : vector<1x8x256xf32> to vector<8x256xf32>
      %49 = vector.extract_strided_slice %48 {offsets = [0, 0], sizes = [1, 64], strides = [1, 1]} : vector<8x256xf32> to vector<1x64xf32>
      %50 = vector.extract_strided_slice %48 {offsets = [1, 0], sizes = [1, 64], strides = [1, 1]} : vector<8x256xf32> to vector<1x64xf32>
      %51 = vector.extract_strided_slice %48 {offsets = [2, 0], sizes = [1, 64], strides = [1, 1]} : vector<8x256xf32> to vector<1x64xf32>
      %52 = vector.extract_strided_slice %48 {offsets = [3, 0], sizes = [1, 64], strides = [1, 1]} : vector<8x256xf32> to vector<1x64xf32>
      %53 = vector.extract_strided_slice %48 {offsets = [4, 0], sizes = [1, 64], strides = [1, 1]} : vector<8x256xf32> to vector<1x64xf32>
      %54 = vector.extract_strided_slice %48 {offsets = [5, 0], sizes = [1, 64], strides = [1, 1]} : vector<8x256xf32> to vector<1x64xf32>
      %55 = vector.extract_strided_slice %48 {offsets = [6, 0], sizes = [1, 256], strides = [1, 1]} : vector<8x256xf32> to vector<1x256xf32>
      %cst_25 = arith.constant dense<0.000000e+00> : vector<16xf32>
      %56 = vector.multi_reduction <add>, %45, %cst_25 [1] : vector<16x64xf32> to vector<16xf32>
      %57 = vector.shape_cast %56 : vector<16xf32> to vector<16x1xf32>
      %cst_26 = arith.constant 6.400000e+01 : f32
      %58 = vector.broadcast %cst_26 : f32 to vector<16x1xf32>
      %59 = arith.divf %57, %58 : vector<16x1xf32>
      %60 = vector.broadcast %59 : vector<16x1xf32> to vector<16x64xf32>
      %61 = arith.subf %45, %60 : vector<16x64xf32>
      %62 = arith.mulf %61, %61 : vector<16x64xf32>
      %cst_27 = arith.constant dense<0.000000e+00> : vector<16xf32>
      %63 = vector.multi_reduction <add>, %62, %cst_27 [1] : vector<16x64xf32> to vector<16xf32>
      %64 = vector.shape_cast %63 : vector<16xf32> to vector<16x1xf32>
      %cst_28 = arith.constant 6.400000e+01 : f32
      %65 = vector.broadcast %cst_28 : f32 to vector<16x1xf32>
      %66 = arith.divf %64, %65 : vector<16x1xf32>
      %67 = vector.broadcast %59 : vector<16x1xf32> to vector<16x64xf32>
      %68 = arith.subf %45, %67 : vector<16x64xf32>
      %cst_29 = arith.constant 9.99999974E-6 : f32
      %69 = vector.broadcast %cst_29 : f32 to vector<16x1xf32>
      %70 = arith.addf %66, %69 : vector<16x1xf32>
      %71 = math.rsqrt %70 : vector<16x1xf32>
      %72 = vector.broadcast %71 : vector<16x1xf32> to vector<16x64xf32>
      %73 = arith.mulf %68, %72 : vector<16x64xf32>
      %74 = vector.broadcast %49 : vector<1x64xf32> to vector<16x64xf32>
      %75 = arith.mulf %73, %74 : vector<16x64xf32>
      %76 = vector.broadcast %50 : vector<1x64xf32> to vector<16x64xf32>
      %77 = arith.addf %75, %76 : vector<16x64xf32>
      %78 = arith.truncf %77 : vector<16x64xf32> to vector<16x64xbf16>
      %79 = arith.index_cast %arg11 : i32 to index
      %c0_30 = arith.constant 0 : index
      %c0_31 = arith.constant 0 : index
      %80 = vector.load %arg3[%79, %c0_30, %c0_31] : memref<8x64x384xbf16, #tpu.memory_space<vmem>>, vector<1x64x384xbf16>
      %81 = vector.shape_cast %80 : vector<1x64x384xbf16> to vector<64x384xbf16>
      %cst_32 = arith.constant dense<0.000000e+00> : vector<16x384xf32>
      %82 = tpu.matmul %78, %81, %cst_32 {dimension_numbers = #tpu.dot_dimension_numbers<[1], [0], [0], [1], [0, 0, 1, 1], [], []>} : vector<16x64xbf16>, vector<64x384xbf16>, vector<16x384xf32> -> vector<16x384xf32>
      %83 = vector.extract_strided_slice %82 {offsets = [0, 0], sizes = [16, 64], strides = [1, 1]} : vector<16x384xf32> to vector<16x64xf32>
      %84 = arith.truncf %83 : vector<16x64xf32> to vector<16x64xbf16>
      %85 = vector.extract_strided_slice %82 {offsets = [0, 128], sizes = [16, 64], strides = [1, 1]} : vector<16x384xf32> to vector<16x64xf32>
      %86 = arith.truncf %85 : vector<16x64xf32> to vector<16x64xbf16>
      %87 = vector.extract_strided_slice %82 {offsets = [0, 256], sizes = [16, 64], strides = [1, 1]} : vector<16x384xf32> to vector<16x64xf32>
      %88 = arith.truncf %87 : vector<16x64xf32> to vector<16x64xbf16>
      %89 = vector.extract_strided_slice %84 {offsets = [0, 0], sizes = [16, 8], strides = [1, 1]} : vector<16x64xbf16> to vector<16x8xbf16>
      %90 = vector.extract_strided_slice %86 {offsets = [0, 0], sizes = [16, 8], strides = [1, 1]} : vector<16x64xbf16> to vector<16x8xbf16>
      %cst_33 = arith.constant dense<0.000000e+00> : vector<16x16xf32>
      %91 = tpu.matmul %89, %90, %cst_33 {dimension_numbers = #tpu.dot_dimension_numbers<[1], [1], [0], [0], [0, 0, 1, 0], [], []>} : vector<16x8xbf16>, vector<16x8xbf16>, vector<16x16xf32> -> vector<16x16xf32>
      %92 = arith.addf %91, %5 : vector<16x16xf32>
      %cst_34 = arith.constant dense<0xFF800000> : vector<16xf32>
      %93 = vector.multi_reduction <maximumf>, %92, %cst_34 [1] : vector<16x16xf32> to vector<16xf32>
      %94 = vector.shape_cast %93 : vector<16xf32> to vector<16x1xf32>
      %95 = vector.broadcast %94 : vector<16x1xf32> to vector<16x16xf32>
      %96 = arith.subf %92, %95 : vector<16x16xf32>
      %97 = math.exp %96 : vector<16x16xf32>
      %cst_35 = arith.constant dense<0.000000e+00> : vector<16xf32>
      %98 = vector.multi_reduction <add>, %97, %cst_35 [1] : vector<16x16xf32> to vector<16xf32>
      %99 = vector.shape_cast %98 : vector<16xf32> to vector<16x1xf32>
      %100 = tpu.reciprocal %99 {approx = true} : vector<16x1xf32> -> vector<16x1xf32>
      %101 = vector.broadcast %100 : vector<16x1xf32> to vector<16x16xf32>
      %102 = arith.mulf %97, %101 : vector<16x16xf32>
      %103 = arith.truncf %102 : vector<16x16xf32> to vector<16x16xbf16>
      %104 = vector.extract_strided_slice %88 {offsets = [0, 0], sizes = [16, 8], strides = [1, 1]} : vector<16x64xbf16> to vector<16x8xbf16>
      %cst_36 = arith.constant dense<0.000000e+00> : vector<16x8xf32>
      %105 = tpu.matmul %103, %104, %cst_36 {dimension_numbers = #tpu.dot_dimension_numbers<[1], [0], [0], [1], [0, 0, 1, 1], [], []>} : vector<16x16xbf16>, vector<16x8xbf16>, vector<16x8xf32> -> vector<16x8xf32>
      %106 = vector.extract_strided_slice %84 {offsets = [0, 8], sizes = [16, 8], strides = [1, 1]} : vector<16x64xbf16> to vector<16x8xbf16>
      %107 = vector.extract_strided_slice %86 {offsets = [0, 8], sizes = [16, 8], strides = [1, 1]} : vector<16x64xbf16> to vector<16x8xbf16>
      %cst_37 = arith.constant dense<0.000000e+00> : vector<16x16xf32>
      %108 = tpu.matmul %106, %107, %cst_37 {dimension_numbers = #tpu.dot_dimension_numbers<[1], [1], [0], [0], [0, 0, 1, 0], [], []>} : vector<16x8xbf16>, vector<16x8xbf16>, vector<16x16xf32> -> vector<16x16xf32>
      %109 = arith.addf %108, %5 : vector<16x16xf32>
      %cst_38 = arith.constant dense<0xFF800000> : vector<16xf32>
      %110 = vector.multi_reduction <maximumf>, %109, %cst_38 [1] : vector<16x16xf32> to vector<16xf32>
      %111 = vector.shape_cast %110 : vector<16xf32> to vector<16x1xf32>
      %112 = vector.broadcast %111 : vector<16x1xf32> to vector<16x16xf32>
      %113 = arith.subf %109, %112 : vector<16x16xf32>
      %114 = math.exp %113 : vector<16x16xf32>
      %cst_39 = arith.constant dense<0.000000e+00> : vector<16xf32>
      %115 = vector.multi_reduction <add>, %114, %cst_39 [1] : vector<16x16xf32> to vector<16xf32>
      %116 = vector.shape_cast %115 : vector<16xf32> to vector<16x1xf32>
      %117 = tpu.reciprocal %116 {approx = true} : vector<16x1xf32> -> vector<16x1xf32>
      %118 = vector.broadcast %117 : vector<16x1xf32> to vector<16x16xf32>
      %119 = arith.mulf %114, %118 : vector<16x16xf32>
      %120 = arith.truncf %119 : vector<16x16xf32> to vector<16x16xbf16>
      %121 = vector.extract_strided_slice %88 {offsets = [0, 8], sizes = [16, 8], strides = [1, 1]} : vector<16x64xbf16> to vector<16x8xbf16>
      %cst_40 = arith.constant dense<0.000000e+00> : vector<16x8xf32>
      %122 = tpu.matmul %120, %121, %cst_40 {dimension_numbers = #tpu.dot_dimension_numbers<[1], [0], [0], [1], [0, 0, 1, 1], [], []>} : vector<16x16xbf16>, vector<16x8xbf16>, vector<16x8xf32> -> vector<16x8xf32>
      %123 = vector.extract_strided_slice %84 {offsets = [0, 16], sizes = [16, 8], strides = [1, 1]} : vector<16x64xbf16> to vector<16x8xbf16>
      %124 = vector.extract_strided_slice %86 {offsets = [0, 16], sizes = [16, 8], strides = [1, 1]} : vector<16x64xbf16> to vector<16x8xbf16>
      %cst_41 = arith.constant dense<0.000000e+00> : vector<16x16xf32>
      %125 = tpu.matmul %123, %124, %cst_41 {dimension_numbers = #tpu.dot_dimension_numbers<[1], [1], [0], [0], [0, 0, 1, 0], [], []>} : vector<16x8xbf16>, vector<16x8xbf16>, vector<16x16xf32> -> vector<16x16xf32>
      %126 = arith.addf %125, %5 : vector<16x16xf32>
      %cst_42 = arith.constant dense<0xFF800000> : vector<16xf32>
      %127 = vector.multi_reduction <maximumf>, %126, %cst_42 [1] : vector<16x16xf32> to vector<16xf32>
      %128 = vector.shape_cast %127 : vector<16xf32> to vector<16x1xf32>
      %129 = vector.broadcast %128 : vector<16x1xf32> to vector<16x16xf32>
      %130 = arith.subf %126, %129 : vector<16x16xf32>
      %131 = math.exp %130 : vector<16x16xf32>
      %cst_43 = arith.constant dense<0.000000e+00> : vector<16xf32>
      %132 = vector.multi_reduction <add>, %131, %cst_43 [1] : vector<16x16xf32> to vector<16xf32>
      %133 = vector.shape_cast %132 : vector<16xf32> to vector<16x1xf32>
      %134 = tpu.reciprocal %133 {approx = true} : vector<16x1xf32> -> vector<16x1xf32>
      %135 = vector.broadcast %134 : vector<16x1xf32> to vector<16x16xf32>
      %136 = arith.mulf %131, %135 : vector<16x16xf32>
      %137 = arith.truncf %136 : vector<16x16xf32> to vector<16x16xbf16>
      %138 = vector.extract_strided_slice %88 {offsets = [0, 16], sizes = [16, 8], strides = [1, 1]} : vector<16x64xbf16> to vector<16x8xbf16>
      %cst_44 = arith.constant dense<0.000000e+00> : vector<16x8xf32>
      %139 = tpu.matmul %137, %138, %cst_44 {dimension_numbers = #tpu.dot_dimension_numbers<[1], [0], [0], [1], [0, 0, 1, 1], [], []>} : vector<16x16xbf16>, vector<16x8xbf16>, vector<16x8xf32> -> vector<16x8xf32>
      %140 = vector.extract_strided_slice %84 {offsets = [0, 24], sizes = [16, 8], strides = [1, 1]} : vector<16x64xbf16> to vector<16x8xbf16>
      %141 = vector.extract_strided_slice %86 {offsets = [0, 24], sizes = [16, 8], strides = [1, 1]} : vector<16x64xbf16> to vector<16x8xbf16>
      %cst_45 = arith.constant dense<0.000000e+00> : vector<16x16xf32>
      %142 = tpu.matmul %140, %141, %cst_45 {dimension_numbers = #tpu.dot_dimension_numbers<[1], [1], [0], [0], [0, 0, 1, 0], [], []>} : vector<16x8xbf16>, vector<16x8xbf16>, vector<16x16xf32> -> vector<16x16xf32>
      %143 = arith.addf %142, %5 : vector<16x16xf32>
      %cst_46 = arith.constant dense<0xFF800000> : vector<16xf32>
      %144 = vector.multi_reduction <maximumf>, %143, %cst_46 [1] : vector<16x16xf32> to vector<16xf32>
      %145 = vector.shape_cast %144 : vector<16xf32> to vector<16x1xf32>
      %146 = vector.broadcast %145 : vector<16x1xf32> to vector<16x16xf32>
      %147 = arith.subf %143, %146 : vector<16x16xf32>
      %148 = math.exp %147 : vector<16x16xf32>
      %cst_47 = arith.constant dense<0.000000e+00> : vector<16xf32>
      %149 = vector.multi_reduction <add>, %148, %cst_47 [1] : vector<16x16xf32> to vector<16xf32>
      %150 = vector.shape_cast %149 : vector<16xf32> to vector<16x1xf32>
      %151 = tpu.reciprocal %150 {approx = true} : vector<16x1xf32> -> vector<16x1xf32>
      %152 = vector.broadcast %151 : vector<16x1xf32> to vector<16x16xf32>
      %153 = arith.mulf %148, %152 : vector<16x16xf32>
      %154 = arith.truncf %153 : vector<16x16xf32> to vector<16x16xbf16>
      %155 = vector.extract_strided_slice %88 {offsets = [0, 24], sizes = [16, 8], strides = [1, 1]} : vector<16x64xbf16> to vector<16x8xbf16>
      %cst_48 = arith.constant dense<0.000000e+00> : vector<16x8xf32>
      %156 = tpu.matmul %154, %155, %cst_48 {dimension_numbers = #tpu.dot_dimension_numbers<[1], [0], [0], [1], [0, 0, 1, 1], [], []>} : vector<16x16xbf16>, vector<16x8xbf16>, vector<16x8xf32> -> vector<16x8xf32>
      %157 = vector.extract_strided_slice %84 {offsets = [0, 32], sizes = [16, 8], strides = [1, 1]} : vector<16x64xbf16> to vector<16x8xbf16>
      %158 = vector.extract_strided_slice %86 {offsets = [0, 32], sizes = [16, 8], strides = [1, 1]} : vector<16x64xbf16> to vector<16x8xbf16>
      %cst_49 = arith.constant dense<0.000000e+00> : vector<16x16xf32>
      %159 = tpu.matmul %157, %158, %cst_49 {dimension_numbers = #tpu.dot_dimension_numbers<[1], [1], [0], [0], [0, 0, 1, 0], [], []>} : vector<16x8xbf16>, vector<16x8xbf16>, vector<16x16xf32> -> vector<16x16xf32>
      %160 = arith.addf %159, %5 : vector<16x16xf32>
      %cst_50 = arith.constant dense<0xFF800000> : vector<16xf32>
      %161 = vector.multi_reduction <maximumf>, %160, %cst_50 [1] : vector<16x16xf32> to vector<16xf32>
      %162 = vector.shape_cast %161 : vector<16xf32> to vector<16x1xf32>
      %163 = vector.broadcast %162 : vector<16x1xf32> to vector<16x16xf32>
      %164 = arith.subf %160, %163 : vector<16x16xf32>
      %165 = math.exp %164 : vector<16x16xf32>
      %cst_51 = arith.constant dense<0.000000e+00> : vector<16xf32>
      %166 = vector.multi_reduction <add>, %165, %cst_51 [1] : vector<16x16xf32> to vector<16xf32>
      %167 = vector.shape_cast %166 : vector<16xf32> to vector<16x1xf32>
      %168 = tpu.reciprocal %167 {approx = true} : vector<16x1xf32> -> vector<16x1xf32>
      %169 = vector.broadcast %168 : vector<16x1xf32> to vector<16x16xf32>
      %170 = arith.mulf %165, %169 : vector<16x16xf32>
      %171 = arith.truncf %170 : vector<16x16xf32> to vector<16x16xbf16>
      %172 = vector.extract_strided_slice %88 {offsets = [0, 32], sizes = [16, 8], strides = [1, 1]} : vector<16x64xbf16> to vector<16x8xbf16>
      %cst_52 = arith.constant dense<0.000000e+00> : vector<16x8xf32>
      %173 = tpu.matmul %171, %172, %cst_52 {dimension_numbers = #tpu.dot_dimension_numbers<[1], [0], [0], [1], [0, 0, 1, 1], [], []>} : vector<16x16xbf16>, vector<16x8xbf16>, vector<16x8xf32> -> vector<16x8xf32>
      %174 = vector.extract_strided_slice %84 {offsets = [0, 40], sizes = [16, 8], strides = [1, 1]} : vector<16x64xbf16> to vector<16x8xbf16>
      %175 = vector.extract_strided_slice %86 {offsets = [0, 40], sizes = [16, 8], strides = [1, 1]} : vector<16x64xbf16> to vector<16x8xbf16>
      %cst_53 = arith.constant dense<0.000000e+00> : vector<16x16xf32>
      %176 = tpu.matmul %174, %175, %cst_53 {dimension_numbers = #tpu.dot_dimension_numbers<[1], [1], [0], [0], [0, 0, 1, 0], [], []>} : vector<16x8xbf16>, vector<16x8xbf16>, vector<16x16xf32> -> vector<16x16xf32>
      %177 = arith.addf %176, %5 : vector<16x16xf32>
      %cst_54 = arith.constant dense<0xFF800000> : vector<16xf32>
      %178 = vector.multi_reduction <maximumf>, %177, %cst_54 [1] : vector<16x16xf32> to vector<16xf32>
      %179 = vector.shape_cast %178 : vector<16xf32> to vector<16x1xf32>
      %180 = vector.broadcast %179 : vector<16x1xf32> to vector<16x16xf32>
      %181 = arith.subf %177, %180 : vector<16x16xf32>
      %182 = math.exp %181 : vector<16x16xf32>
      %cst_55 = arith.constant dense<0.000000e+00> : vector<16xf32>
      %183 = vector.multi_reduction <add>, %182, %cst_55 [1] : vector<16x16xf32> to vector<16xf32>
      %184 = vector.shape_cast %183 : vector<16xf32> to vector<16x1xf32>
      %185 = tpu.reciprocal %184 {approx = true} : vector<16x1xf32> -> vector<16x1xf32>
      %186 = vector.broadcast %185 : vector<16x1xf32> to vector<16x16xf32>
      %187 = arith.mulf %182, %186 : vector<16x16xf32>
      %188 = arith.truncf %187 : vector<16x16xf32> to vector<16x16xbf16>
      %189 = vector.extract_strided_slice %88 {offsets = [0, 40], sizes = [16, 8], strides = [1, 1]} : vector<16x64xbf16> to vector<16x8xbf16>
      %cst_56 = arith.constant dense<0.000000e+00> : vector<16x8xf32>
      %190 = tpu.matmul %188, %189, %cst_56 {dimension_numbers = #tpu.dot_dimension_numbers<[1], [0], [0], [1], [0, 0, 1, 1], [], []>} : vector<16x16xbf16>, vector<16x8xbf16>, vector<16x8xf32> -> vector<16x8xf32>
      %191 = vector.extract_strided_slice %84 {offsets = [0, 48], sizes = [16, 8], strides = [1, 1]} : vector<16x64xbf16> to vector<16x8xbf16>
      %192 = vector.extract_strided_slice %86 {offsets = [0, 48], sizes = [16, 8], strides = [1, 1]} : vector<16x64xbf16> to vector<16x8xbf16>
      %cst_57 = arith.constant dense<0.000000e+00> : vector<16x16xf32>
      %193 = tpu.matmul %191, %192, %cst_57 {dimension_numbers = #tpu.dot_dimension_numbers<[1], [1], [0], [0], [0, 0, 1, 0], [], []>} : vector<16x8xbf16>, vector<16x8xbf16>, vector<16x16xf32> -> vector<16x16xf32>
      %194 = arith.addf %193, %5 : vector<16x16xf32>
      %cst_58 = arith.constant dense<0xFF800000> : vector<16xf32>
      %195 = vector.multi_reduction <maximumf>, %194, %cst_58 [1] : vector<16x16xf32> to vector<16xf32>
      %196 = vector.shape_cast %195 : vector<16xf32> to vector<16x1xf32>
      %197 = vector.broadcast %196 : vector<16x1xf32> to vector<16x16xf32>
      %198 = arith.subf %194, %197 : vector<16x16xf32>
      %199 = math.exp %198 : vector<16x16xf32>
      %cst_59 = arith.constant dense<0.000000e+00> : vector<16xf32>
      %200 = vector.multi_reduction <add>, %199, %cst_59 [1] : vector<16x16xf32> to vector<16xf32>
      %201 = vector.shape_cast %200 : vector<16xf32> to vector<16x1xf32>
      %202 = tpu.reciprocal %201 {approx = true} : vector<16x1xf32> -> vector<16x1xf32>
      %203 = vector.broadcast %202 : vector<16x1xf32> to vector<16x16xf32>
      %204 = arith.mulf %199, %203 : vector<16x16xf32>
      %205 = arith.truncf %204 : vector<16x16xf32> to vector<16x16xbf16>
      %206 = vector.extract_strided_slice %88 {offsets = [0, 48], sizes = [16, 8], strides = [1, 1]} : vector<16x64xbf16> to vector<16x8xbf16>
      %cst_60 = arith.constant dense<0.000000e+00> : vector<16x8xf32>
      %207 = tpu.matmul %205, %206, %cst_60 {dimension_numbers = #tpu.dot_dimension_numbers<[1], [0], [0], [1], [0, 0, 1, 1], [], []>} : vector<16x16xbf16>, vector<16x8xbf16>, vector<16x8xf32> -> vector<16x8xf32>
      %208 = vector.extract_strided_slice %84 {offsets = [0, 56], sizes = [16, 8], strides = [1, 1]} : vector<16x64xbf16> to vector<16x8xbf16>
      %209 = vector.extract_strided_slice %86 {offsets = [0, 56], sizes = [16, 8], strides = [1, 1]} : vector<16x64xbf16> to vector<16x8xbf16>
      %cst_61 = arith.constant dense<0.000000e+00> : vector<16x16xf32>
      %210 = tpu.matmul %208, %209, %cst_61 {dimension_numbers = #tpu.dot_dimension_numbers<[1], [1], [0], [0], [0, 0, 1, 0], [], []>} : vector<16x8xbf16>, vector<16x8xbf16>, vector<16x16xf32> -> vector<16x16xf32>
      %211 = arith.addf %210, %5 : vector<16x16xf32>
      %cst_62 = arith.constant dense<0xFF800000> : vector<16xf32>
      %212 = vector.multi_reduction <maximumf>, %211, %cst_62 [1] : vector<16x16xf32> to vector<16xf32>
      %213 = vector.shape_cast %212 : vector<16xf32> to vector<16x1xf32>
      %214 = vector.broadcast %213 : vector<16x1xf32> to vector<16x16xf32>
      %215 = arith.subf %211, %214 : vector<16x16xf32>
      %216 = math.exp %215 : vector<16x16xf32>
      %cst_63 = arith.constant dense<0.000000e+00> : vector<16xf32>
      %217 = vector.multi_reduction <add>, %216, %cst_63 [1] : vector<16x16xf32> to vector<16xf32>
      %218 = vector.shape_cast %217 : vector<16xf32> to vector<16x1xf32>
      %219 = tpu.reciprocal %218 {approx = true} : vector<16x1xf32> -> vector<16x1xf32>
      %220 = vector.broadcast %219 : vector<16x1xf32> to vector<16x16xf32>
      %221 = arith.mulf %216, %220 : vector<16x16xf32>
      %222 = arith.truncf %221 : vector<16x16xf32> to vector<16x16xbf16>
      %223 = vector.extract_strided_slice %88 {offsets = [0, 56], sizes = [16, 8], strides = [1, 1]} : vector<16x64xbf16> to vector<16x8xbf16>
      %cst_64 = arith.constant dense<0.000000e+00> : vector<16x8xf32>
      %224 = tpu.matmul %222, %223, %cst_64 {dimension_numbers = #tpu.dot_dimension_numbers<[1], [0], [0], [1], [0, 0, 1, 1], [], []>} : vector<16x16xbf16>, vector<16x8xbf16>, vector<16x8xf32> -> vector<16x8xf32>
      %225 = tpu.concatenate %105, %122, %139, %156, %173, %190, %207, %224 in 1 : vector<16x8xf32>, vector<16x8xf32>, vector<16x8xf32>, vector<16x8xf32>, vector<16x8xf32>, vector<16x8xf32>, vector<16x8xf32>, vector<16x8xf32> -> vector<16x64xf32>
      %226 = arith.truncf %225 : vector<16x64xf32> to vector<16x64xbf16>
      %227 = arith.index_cast %arg11 : i32 to index
      %c0_65 = arith.constant 0 : index
      %c0_66 = arith.constant 0 : index
      %228 = vector.load %arg4[%227, %c0_65, %c0_66] : memref<8x64x64xbf16, #tpu.memory_space<vmem>>, vector<1x64x64xbf16>
      %229 = vector.shape_cast %228 : vector<1x64x64xbf16> to vector<64x64xbf16>
      %cst_67 = arith.constant dense<0.000000e+00> : vector<16x64xf32>
      %230 = tpu.matmul %226, %229, %cst_67 {dimension_numbers = #tpu.dot_dimension_numbers<[1], [0], [0], [1], [0, 0, 1, 1], [], []>} : vector<16x64xbf16>, vector<64x64xbf16>, vector<16x64xf32> -> vector<16x64xf32>
      %231 = vector.broadcast %51 : vector<1x64xf32> to vector<16x64xf32>
      %232 = arith.addf %230, %231 : vector<16x64xf32>
      %233 = arith.addf %45, %232 : vector<16x64xf32>
      %cst_68 = arith.constant dense<0.000000e+00> : vector<16xf32>
      %234 = vector.multi_reduction <add>, %233, %cst_68 [1] : vector<16x64xf32> to vector<16xf32>
      %235 = vector.shape_cast %234 : vector<16xf32> to vector<16x1xf32>
      %cst_69 = arith.constant 6.400000e+01 : f32
      %236 = vector.broadcast %cst_69 : f32 to vector<16x1xf32>
      %237 = arith.divf %235, %236 : vector<16x1xf32>
      %238 = vector.broadcast %237 : vector<16x1xf32> to vector<16x64xf32>
      %239 = arith.subf %233, %238 : vector<16x64xf32>
      %240 = arith.mulf %239, %239 : vector<16x64xf32>
      %cst_70 = arith.constant dense<0.000000e+00> : vector<16xf32>
      %241 = vector.multi_reduction <add>, %240, %cst_70 [1] : vector<16x64xf32> to vector<16xf32>
      %242 = vector.shape_cast %241 : vector<16xf32> to vector<16x1xf32>
      %cst_71 = arith.constant 6.400000e+01 : f32
      %243 = vector.broadcast %cst_71 : f32 to vector<16x1xf32>
      %244 = arith.divf %242, %243 : vector<16x1xf32>
      %245 = vector.broadcast %237 : vector<16x1xf32> to vector<16x64xf32>
      %246 = arith.subf %233, %245 : vector<16x64xf32>
      %cst_72 = arith.constant 9.99999974E-6 : f32
      %247 = vector.broadcast %cst_72 : f32 to vector<16x1xf32>
      %248 = arith.addf %244, %247 : vector<16x1xf32>
      %249 = math.rsqrt %248 : vector<16x1xf32>
      %250 = vector.broadcast %249 : vector<16x1xf32> to vector<16x64xf32>
      %251 = arith.mulf %246, %250 : vector<16x64xf32>
      %252 = vector.broadcast %52 : vector<1x64xf32> to vector<16x64xf32>
      %253 = arith.mulf %251, %252 : vector<16x64xf32>
      %254 = vector.broadcast %53 : vector<1x64xf32> to vector<16x64xf32>
      %255 = arith.addf %253, %254 : vector<16x64xf32>
      %256 = arith.truncf %255 : vector<16x64xf32> to vector<16x64xbf16>
      %257 = arith.index_cast %arg11 : i32 to index
      %c0_73 = arith.constant 0 : index
      %c0_74 = arith.constant 0 : index
      %258 = vector.load %arg5[%257, %c0_73, %c0_74] : memref<8x64x256xbf16, #tpu.memory_space<vmem>>, vector<1x64x256xbf16>
      %259 = vector.shape_cast %258 : vector<1x64x256xbf16> to vector<64x256xbf16>
      %cst_75 = arith.constant dense<0.000000e+00> : vector<16x256xf32>
      %260 = tpu.matmul %256, %259, %cst_75 {dimension_numbers = #tpu.dot_dimension_numbers<[1], [0], [0], [1], [0, 0, 1, 1], [], []>} : vector<16x64xbf16>, vector<64x256xbf16>, vector<16x256xf32> -> vector<16x256xf32>
      %261 = vector.broadcast %55 : vector<1x256xf32> to vector<16x256xf32>
      %262 = arith.addf %260, %261 : vector<16x256xf32>
      %cst_76 = arith.constant 0.000000e+00 : f32
      %263 = vector.broadcast %cst_76 : f32 to vector<16x256xf32>
      %264 = arith.maximumf %262, %263 : vector<16x256xf32>
      %265 = arith.truncf %264 : vector<16x256xf32> to vector<16x256xbf16>
      %266 = arith.index_cast %arg11 : i32 to index
      %c0_77 = arith.constant 0 : index
      %c0_78 = arith.constant 0 : index
      %267 = vector.load %arg6[%266, %c0_77, %c0_78] : memref<8x256x64xbf16, #tpu.memory_space<vmem>>, vector<1x256x64xbf16>
      %268 = vector.shape_cast %267 : vector<1x256x64xbf16> to vector<256x64xbf16>
      %cst_79 = arith.constant dense<0.000000e+00> : vector<16x64xf32>
      %269 = tpu.matmul %265, %268, %cst_79 {dimension_numbers = #tpu.dot_dimension_numbers<[1], [0], [0], [1], [0, 0, 1, 1], [], []>} : vector<16x256xbf16>, vector<256x64xbf16>, vector<16x64xf32> -> vector<16x64xf32>
      %270 = vector.broadcast %54 : vector<1x64xf32> to vector<16x64xf32>
      %271 = arith.addf %269, %270 : vector<16x64xf32>
      %272 = arith.addf %233, %271 : vector<16x64xf32>
      %c0_80 = arith.constant 0 : index
      %c0_81 = arith.constant 0 : index
      %273 = vector.load %arg10[%c0_80, %c0_81] : memref<16x64xf32, #tpu.memory_space<vmem>>, vector<16x64xf32>
      tpu.vector_store %arg10[%c0_80, %c0_81], %272 {strides = array<i32>} : memref<16x64xf32, #tpu.memory_space<vmem>>, vector<16x64xf32>,
    }
    %c8_i32_5 = arith.constant 8 : i32
    %c0_6 = arith.constant 0 : index
    %c0_7 = arith.constant 0 : index
    %10 = vector.load %arg10[%c0_6, %c0_7] : memref<16x64xf32, #tpu.memory_space<vmem>>, vector<16x64xf32>
    %c0_8 = arith.constant 0 : index
    %c0_9 = arith.constant 0 : index
    %11 = vector.load %arg7[%c0_8, %c0_9] : memref<8x128xf32, #tpu.memory_space<vmem>>, vector<8x128xf32>
    %12 = vector.extract_strided_slice %11 {offsets = [0, 0], sizes = [1, 64], strides = [1, 1]} : vector<8x128xf32> to vector<1x64xf32>
    %13 = vector.extract_strided_slice %11 {offsets = [1, 0], sizes = [1, 64], strides = [1, 1]} : vector<8x128xf32> to vector<1x64xf32>
    %14 = vector.extract_strided_slice %11 {offsets = [2, 0], sizes = [1, 128], strides = [1, 1]} : vector<8x128xf32> to vector<1x128xf32>
    %cst_10 = arith.constant dense<0.000000e+00> : vector<16xf32>
    %15 = vector.multi_reduction <add>, %10, %cst_10 [1] : vector<16x64xf32> to vector<16xf32>
    %16 = vector.shape_cast %15 : vector<16xf32> to vector<16x1xf32>
    %cst_11 = arith.constant 6.400000e+01 : f32
    %17 = vector.broadcast %cst_11 : f32 to vector<16x1xf32>
    %18 = arith.divf %16, %17 : vector<16x1xf32>
    %19 = vector.broadcast %18 : vector<16x1xf32> to vector<16x64xf32>
    %20 = arith.subf %10, %19 : vector<16x64xf32>
    %21 = arith.mulf %20, %20 : vector<16x64xf32>
    %cst_12 = arith.constant dense<0.000000e+00> : vector<16xf32>
    %22 = vector.multi_reduction <add>, %21, %cst_12 [1] : vector<16x64xf32> to vector<16xf32>
    %23 = vector.shape_cast %22 : vector<16xf32> to vector<16x1xf32>
    %cst_13 = arith.constant 6.400000e+01 : f32
    %24 = vector.broadcast %cst_13 : f32 to vector<16x1xf32>
    %25 = arith.divf %23, %24 : vector<16x1xf32>
    %26 = vector.broadcast %18 : vector<16x1xf32> to vector<16x64xf32>
    %27 = arith.subf %10, %26 : vector<16x64xf32>
    %cst_14 = arith.constant 9.99999974E-6 : f32
    %28 = vector.broadcast %cst_14 : f32 to vector<16x1xf32>
    %29 = arith.addf %25, %28 : vector<16x1xf32>
    %30 = math.rsqrt %29 : vector<16x1xf32>
    %31 = vector.broadcast %30 : vector<16x1xf32> to vector<16x64xf32>
    %32 = arith.mulf %27, %31 : vector<16x64xf32>
    %33 = vector.broadcast %12 : vector<1x64xf32> to vector<16x64xf32>
    %34 = arith.mulf %32, %33 : vector<16x64xf32>
    %35 = vector.broadcast %13 : vector<1x64xf32> to vector<16x64xf32>
    %36 = arith.addf %34, %35 : vector<16x64xf32>
    %37 = arith.truncf %36 : vector<16x64xf32> to vector<16x64xbf16>
    %c0_15 = arith.constant 0 : index
    %c0_16 = arith.constant 0 : index
    %38 = vector.load %arg8[%c0_15, %c0_16] : memref<64x128xbf16, #tpu.memory_space<vmem>>, vector<64x128xbf16>
    %cst_17 = arith.constant dense<0.000000e+00> : vector<16x128xf32>
    %39 = tpu.matmul %37, %38, %cst_17 {dimension_numbers = #tpu.dot_dimension_numbers<[1], [0], [0], [1], [0, 0, 1, 1], [], []>} : vector<16x64xbf16>, vector<64x128xbf16>, vector<16x128xf32> -> vector<16x128xf32>
    %40 = vector.broadcast %14 : vector<1x128xf32> to vector<16x128xf32>
    %41 = arith.addf %39, %40 : vector<16x128xf32>
    %c0_18 = arith.constant 0 : index
    %c0_19 = arith.constant 0 : index
    %c0_20 = arith.constant 0 : index
    %42 = vector.load %arg9[%c0_18, %c0_19, %c0_20] : memref<1x16x128xf32, #tpu.memory_space<vmem>>, vector<1x16x128xf32>
    %43 = vector.shape_cast %42 : vector<1x16x128xf32> to vector<16x128xf32>
    %44 = vector.shape_cast %41 : vector<16x128xf32> to vector<1x16x128xf32>
    tpu.vector_store %arg9[%c0_18, %c0_19, %c0_20], %44 {strides = array<i32>} : memref<1x16x128xf32, #tpu.memory_space<vmem>>, vector<1x16x128xf32>,
    return
  }
  func.func @transform_0(%arg0: i32) -> (i32, i32, i32) {
    %c0_i32 = arith.constant 0 : i32
    %c0_i32_0 = arith.constant 0 : i32
    %c0_i32_1 = arith.constant 0 : i32
    return %arg0, %c0_i32, %c0_i32_0 : i32, i32, i32
  }
  func.func @transform_1(%arg0: i32) -> (i32, i32, i32) {
    %c0_i32 = arith.constant 0 : i32
    %c0_i32_0 = arith.constant 0 : i32
    %c0_i32_1 = arith.constant 0 : i32
    %c0_i32_2 = arith.constant 0 : i32
    return %c0_i32, %c0_i32_0, %c0_i32_1 : i32, i32, i32
  }
  func.func @transform_2(%arg0: i32) -> (i32, i32, i32) {
    %c0_i32 = arith.constant 0 : i32
    %c0_i32_0 = arith.constant 0 : i32
    %c0_i32_1 = arith.constant 0 : i32
    %c0_i32_2 = arith.constant 0 : i32
    return %c0_i32, %c0_i32_0, %c0_i32_1 : i32, i32, i32
  }
  func.func @transform_3(%arg0: i32) -> (i32, i32, i32) {
    %c0_i32 = arith.constant 0 : i32
    %c0_i32_0 = arith.constant 0 : i32
    %c0_i32_1 = arith.constant 0 : i32
    %c0_i32_2 = arith.constant 0 : i32
    return %c0_i32, %c0_i32_0, %c0_i32_1 : i32, i32, i32
  }
  func.func @transform_4(%arg0: i32) -> (i32, i32, i32) {
    %c0_i32 = arith.constant 0 : i32
    %c0_i32_0 = arith.constant 0 : i32
    %c0_i32_1 = arith.constant 0 : i32
    %c0_i32_2 = arith.constant 0 : i32
    return %c0_i32, %c0_i32_0, %c0_i32_1 : i32, i32, i32
  }
  func.func @transform_5(%arg0: i32) -> (i32, i32, i32) {
    %c0_i32 = arith.constant 0 : i32
    %c0_i32_0 = arith.constant 0 : i32
    %c0_i32_1 = arith.constant 0 : i32
    %c0_i32_2 = arith.constant 0 : i32
    return %c0_i32, %c0_i32_0, %c0_i32_1 : i32, i32, i32
  }
  func.func @transform_6(%arg0: i32) -> (i32, i32) {
    %c0_i32 = arith.constant 0 : i32
    %c0_i32_0 = arith.constant 0 : i32
    %c0_i32_1 = arith.constant 0 : i32
    return %c0_i32, %c0_i32_0 : i32, i32
  }
  func.func @transform_7(%arg0: i32) -> (i32, i32) {
    %c0_i32 = arith.constant 0 : i32
    %c0_i32_0 = arith.constant 0 : i32
    %c0_i32_1 = arith.constant 0 : i32
    return %c0_i32, %c0_i32_0 : i32, i32
  }
  func.func @transform_8(%arg0: i32) -> (i32, i32, i32) {
    %c0_i32 = arith.constant 0 : i32
    %c0_i32_0 = arith.constant 0 : i32
    %c0_i32_1 = arith.constant 0 : i32
    return %arg0, %c0_i32, %c0_i32_0 : i32, i32, i32
  }
}

</mosaic_0001>

<llo_original>
// kernel: heart_gpt_forward.1
$region0: #{heart_gpt_forward.1}
  #allocation0 [shape = 'u32[]', space=smem, size = 0x4, offset = 0x4, fixed_abs, tag = 'smem constant byte address 0x4 - core index']
  #allocation1 [shape = 'u32[144,128]{1,0:T(1,128)}', space=vmem, size = 0x12000, scoped, tag = 'internal scratch']
  #allocation2 [shape = 'f32[16,64]{1,0:T(8,128)}', space=vmem, size = 0x2000, scoped, tag = 'scratch operand']
  %s0 = inlined_call_operand.vmem [shape: f32[2,16,64], index: 0, kind: input, shape index: {}]
  %s1 = inlined_call_operand.vmem [shape: f32[8,8,256], index: 1, kind: input, shape index: {}]
  %s2 = inlined_call_operand.vmem [shape: bf16[8,64,384], index: 2, kind: input, shape index: {}]
  %s3 = inlined_call_operand.vmem [shape: bf16[8,64,64], index: 3, kind: input, shape index: {}]
  %s4 = inlined_call_operand.vmem [shape: bf16[8,64,256], index: 4, kind: input, shape index: {}]
  %s5 = inlined_call_operand.vmem [shape: bf16[8,256,64], index: 5, kind: input, shape index: {}]
  %s6 = inlined_call_operand.vmem [shape: f32[8,128], index: 6, kind: input, shape index: {}]
  %s7 = inlined_call_operand.vmem [shape: bf16[64,128], index: 7, kind: input, shape index: {}]
  %s8 = inlined_call_operand.hbm [shape: f32[2,16,128], index: 8, kind: output, shape index: {}]
  %s9 = sld [smem:[#allocation0]]
  $region72: #{heart_gpt_forward.1} parent=0
    _
  %s11 = ssub.s32 1, %s9
  %s12 = scalar_select 0, %s11, %s9
  $region1: #{heart_gpt_forward.1} parent=0
    #allocation3 [shape = 'u8[16384]{0}', space=vmem, size = 0x4000, scoped, tag = 'output window, operand 0']
    #allocation4 [shape = 's32[2]{0}', space=sflag, size = 0x8, scoped, tag = 'scoped memory for heart_gpt_forward.1']
    %13 = vsyncpa [#allocation4], 0
    %s14 = scalar_lea.sflag [#allocation4], 1
    %15 = vsyncpa %s14, 0
    loop: start=0, step=1, limit=4
    $region2: #{heart_gpt_forward.1} parent=1 // loop_pre_header
      _
    $region3: #{heart_gpt_forward.1} parent=1 // loop_header
      %s17 = sphi 0, %s21
      %p18 = scmp.ge.s32.totalorder %s17, 4
      %s27 = sphi 0, %s29
      %s30 = sphi 0, %s27
      %s31 = sphi 0, %s30
      %s47 = sphi 0, %s31
      %s51 = sphi 0, %s51
      %s53 = sphi 0, %s51
      %s54 = sphi 0, %s53
      %s68 = sphi 0, %s54
      %s72 = sphi 0, %s72
      %s74 = sphi 0, %s72
      %s75 = sphi 0, %s74
      %s89 = sphi 0, %s75
      %s93 = sphi 0, %s93
      %s95 = sphi 0, %s93
      %s96 = sphi 0, %s95
      %s110 = sphi 0, %s96
      %s114 = sphi 0, %s114
      %s116 = sphi 0, %s114
      %s117 = sphi 0, %s116
      %s131 = sphi 0, %s117
      %s135 = sphi 0, %s135
      %s137 = sphi 0, %s135
      %s138 = sphi 0, %s137
      %s152 = sphi 0, %s138
      %s156 = sphi 0, %s156
      %s158 = sphi 0, %s156
      %s159 = sphi 0, %s158
      %s173 = sphi 0, %s159
      %s177 = sphi 0, %s177
      %s179 = sphi 0, %s177
      %s180 = sphi 0, %s179
      %s194 = sphi 0, %s180
      %s200 = sphi 0, %s202
      %s203 = sphi 0, %s200
      %s204 = sphi 0, %s203
      %s220 = sphi 0, %s204
    $region4: #{heart_gpt_forward.1} parent=1 // loop_header_branch
      %20 = sbr.rel (%p18) target = $region8
    $region5: #{heart_gpt_forward.1} parent=1 // loop_body
      %s22 = ssub.s32 %s17, 1
      %s23 = ssub.s32 %s17, 2
      %s24 = sadd.s32 %s17, 1
      %s25 = ssub.s32 %s17, %s24
      %p26 = scmp.eq.s32.totalorder %s25, 0
      %s28 = sadd.s32 %s27, 1
      %s29 = scalar_select %p26, %s27, %s28
      %p32 = pneg %p26
      %p33 = scmp.eq.s32.totalorder %s17, 1
      %p34 = por %p32, %p33
      %p35 = scmp.ne.s32.totalorder %s27, %s30
      %p36 = scmp.eq.s32.totalorder %s17, 0
      %p37 = por %p35, %p36
      %p38 = scmp.ne.s32.totalorder %s27, %s30
      %p39 = scmp.eq.s32.totalorder %s22, 1
      %p40 = por %p38, %p39
      %p41 = scmp.ne.s32.totalorder %s30, %s31
      %p42 = scmp.eq.s32.totalorder %s22, 0
      %p43 = por %p41, %p42
      %p44 = scmp.ne.s32.totalorder %s30, %s31
      %p45 = scmp.eq.s32.totalorder %s23, 1
      %p46 = por %p44, %p45
      %p48 = scmp.ne.s32.totalorder %s31, %s47
      %p49 = scmp.eq.s32.totalorder %s23, 0
      %p50 = por %p48, %p49
      %s52 = sadd.s32 %s51, 1
      %p55 = scmp.eq.s32.totalorder %s17, 1
      %p56 = scmp.ne.s32.totalorder %s51, %s53
      %p57 = scmp.eq.s32.totalorder %s17, 0
      %p58 = por %p56, %p57
      %p59 = scmp.ne.s32.totalorder %s51, %s53
      %p60 = scmp.eq.s32.totalorder %s22, 1
      %p61 = por %p59, %p60
      %p62 = scmp.ne.s32.totalorder %s53, %s54
      %p63 = scmp.eq.s32.totalorder %s22, 0
      %p64 = por %p62, %p63
      %p65 = scmp.ne.s32.totalorder %s53, %s54
      %p66 = scmp.eq.s32.totalorder %s23, 1
      %p67 = por %p65, %p66
      %p69 = scmp.ne.s32.totalorder %s54, %s68
      %p70 = scmp.eq.s32.totalorder %s23, 0
      %p71 = por %p69, %p70
      %s73 = sadd.s32 %s72, 1
      %p76 = scmp.eq.s32.totalorder %s17, 1
      %p77 = scmp.ne.s32.totalorder %s72, %s74
      %p78 = scmp.eq.s32.totalorder %s17, 0
      %p79 = por %p77, %p78
      %p80 = scmp.ne.s32.totalorder %s72, %s74
      %p81 = scmp.eq.s32.totalorder %s22, 1
      %p82 = por %p80, %p81
      %p83 = scmp.ne.s32.totalorder %s74, %s75
      %p84 = scmp.eq.s32.totalorder %s22, 0
      %p85 = por %p83, %p84
      %p86 = scmp.ne.s32.totalorder %s74, %s75
      %p87 = scmp.eq.s32.totalorder %s23, 1
      %p88 = por %p86, %p87
      %p90 = scmp.ne.s32.totalorder %s75, %s89
      %p91 = scmp.eq.s32.totalorder %s23, 0
      %p92 = por %p90, %p91
      %s94 = sadd.s32 %s93, 1
      %p97 = scmp.eq.s32.totalorder %s17, 1
      %p98 = scmp.ne.s32.totalorder %s93, %s95
      %p99 = scmp.eq.s32.totalorder %s17, 0
      %p100 = por %p98, %p99
      %p101 = scmp.ne.s32.totalorder %s93, %s95
      %p102 = scmp.eq.s32.totalorder %s22, 1
      %p103 = por %p101, %p102
      %p104 = scmp.ne.s32.totalorder %s95, %s96
      %p105 = scmp.eq.s32.totalorder %s22, 0
      %p106 = por %p104, %p105
      %p107 = scmp.ne.s32.totalorder %s95, %s96
      %p108 = scmp.eq.s32.totalorder %s23, 1
      %p109 = por %p107, %p108
      %p111 = scmp.ne.s32.totalorder %s96, %s110
      %p112 = scmp.eq.s32.totalorder %s23, 0
      %p113 = por %p111, %p112
      %s115 = sadd.s32 %s114, 1
      %p118 = scmp.eq.s32.totalorder %s17, 1
      %p119 = scmp.ne.s32.totalorder %s114, %s116
      %p120 = scmp.eq.s32.totalorder %s17, 0
      %p121 = por %p119, %p120
      %p122 = scmp.ne.s32.totalorder %s114, %s116
      %p123 = scmp.eq.s32.totalorder %s22, 1
      %p124 = por %p122, %p123
      %p125 = scmp.ne.s32.totalorder %s116, %s117
      %p126 = scmp.eq.s32.totalorder %s22, 0
      %p127 = por %p125, %p126
      %p128 = scmp.ne.s32.totalorder %s116, %s117
      %p129 = scmp.eq.s32.totalorder %s23, 1
      %p130 = por %p128, %p129
      %p132 = scmp.ne.s32.totalorder %s117, %s131
      %p133 = scmp.eq.s32.totalorder %s23, 0
      %p134 = por %p132, %p133
      %s136 = sadd.s32 %s135, 1
      %p139 = scmp.eq.s32.totalorder %s17, 1
      %p140 = scmp.ne.s32.totalorder %s135, %s137
      %p141 = scmp.eq.s32.totalorder %s17, 0
      %p142 = por %p140, %p141
      %p143 = scmp.ne.s32.totalorder %s135, %s137
      %p144 = scmp.eq.s32.totalorder %s22, 1
      %p145 = por %p143, %p144
      %p146 = scmp.ne.s32.totalorder %s137, %s138
      %p147 = scmp.eq.s32.totalorder %s22, 0
      %p148 = por %p146, %p147
      %p149 = scmp.ne.s32.totalorder %s137, %s138
      %p150 = scmp.eq.s32.totalorder %s23, 1
      %p151 = por %p149, %p150
      %p153 = scmp.ne.s32.totalorder %s138, %s152
      %p154 = scmp.eq.s32.totalorder %s23, 0
      %p155 = por %p153, %p154
      %s157 = sadd.s32 %s156, 1
      %p160 = scmp.eq.s32.totalorder %s17, 1
      %p161 = scmp.ne.s32.totalorder %s156, %s158
      %p162 = scmp.eq.s32.totalorder %s17, 0
      %p163 = por %p161, %p162
      %p164 = scmp.ne.s32.totalorder %s156, %s158
      %p165 = scmp.eq.s32.totalorder %s22, 1
      %p166 = por %p164, %p165
      %p167 = scmp.ne.s32.totalorder %s158, %s159
      %p168 = scmp.eq.s32.totalorder %s22, 0
      %p169 = por %p167, %p168
      %p170 = scmp.ne.s32.totalorder %s158, %s159
      %p171 = scmp.eq.s32.totalorder %s23, 1
      %p172 = por %p170, %p171
      %p174 = scmp.ne.s32.totalorder %s159, %s173
      %p175 = scmp.eq.s32.totalorder %s23, 0
      %p176 = por %p174, %p175
      %s178 = sadd.s32 %s177, 1
      %p181 = scmp.eq.s32.totalorder %s17, 1
      %p182 = scmp.ne.s32.totalorder %s177, %s179
      %p183 = scmp.eq.s32.totalorder %s17, 0
      %p184 = por %p182, %p183
      %p185 = scmp.ne.s32.totalorder %s177, %s179
      %p186 = scmp.eq.s32.totalorder %s22, 1
      %p187 = por %p185, %p186
      %p188 = scmp.ne.s32.totalorder %s179, %s180
      %p189 = scmp.eq.s32.totalorder %s22, 0
      %p190 = por %p188, %p189
      %p191 = scmp.ne.s32.totalorder %s179, %s180
      %p192 = scmp.eq.s32.totalorder %s23, 1
      %p193 = por %p191, %p192
      %p195 = scmp.ne.s32.totalorder %s180, %s194
      %p196 = scmp.eq.s32.totalorder %s23, 0
      %p197 = por %p195, %p196
      %s198 = ssub.s32 %s17, %s24
      %p199 = scmp.eq.s32.totalorder %s198, 0
      %s201 = sadd.s32 %s200, 1
      %s202 = scalar_select %p199, %s200, %s201
      %p205 = pneg %p199
      %p206 = scmp.eq.s32.totalorder %s17, 1
      %p207 = por %p205, %p206
      %p208 = scmp.ne.s32.totalorder %s200, %s203
      %p209 = scmp.eq.s32.totalorder %s17, 0
      %p210 = por %p208, %p209
      %p211 = scmp.ne.s32.totalorder %s200, %s203
      %p212 = scmp.eq.s32.totalorder %s22, 1
      %p213 = por %p211, %p212
      %p214 = scmp.ne.s32.totalorder %s203, %s204
      %p215 = scmp.eq.s32.totalorder %s22, 0
      %p216 = por %p214, %p215
      %p217 = scmp.ne.s32.totalorder %s203, %s204
      %p218 = scmp.eq.s32.totalorder %s23, 1
      %p219 = por %p217, %p218
      %p221 = scmp.ne.s32.totalorder %s204, %s220
      %p222 = scmp.eq.s32.totalorder %s23, 0
      %p223 = por %p221, %p222
      %p224 = scmp.le.s32.totalorder 1, %s17
      %p225 = scmp.lt.s32.totalorder %s17, 3
      %p226 = pnand %p224, %p225
      %p227 = pneg %p226
      // Predicated region
      $region9: #{heart_gpt_forward.1} parent=5 // pred_check
        _
      $region10: #{heart_gpt_forward.1} parent=5 // pred_check_branch
        %229 = sbr.rel (%p226) target = $region12
      $region11: #{heart_gpt_forward.1} parent=5 // pred_region
        %s230 = ssub.s32 %s17, 1
        // Predicated region
        $region13: #{heart_gpt_forward.1} parent=11 // pred_check
          %p231 = pneg %p64
        $region14: #{heart_gpt_forward.1} parent=11 // pred_check_branch
          %233 = sbr.rel (%p231) target = $region16
        $region15: #{heart_gpt_forward.1} parent=11 // pred_region
          _
        $region16: #{heart_gpt_forward.1} parent=11 // pred_fallthru
          _
        // Predicated region
        $region17: #{heart_gpt_forward.1} parent=11 // pred_check
          %p234 = pneg %p85
        $region18: #{heart_gpt_forward.1} parent=11 // pred_check_branch
          %236 = sbr.rel (%p234) target = $region20
        $region19: #{heart_gpt_forward.1} parent=11 // pred_region
          _
        $region20: #{heart_gpt_forward.1} parent=11 // pred_fallthru
          _
        // Predicated region
        $region21: #{heart_gpt_forward.1} parent=11 // pred_check
          %p237 = pneg %p106
        $region22: #{heart_gpt_forward.1} parent=11 // pred_check_branch
          %239 = sbr.rel (%p237) target = $region24
        $region23: #{heart_gpt_forward.1} parent=11 // pred_region
          _
        $region24: #{heart_gpt_forward.1} parent=11 // pred_fallthru
          _
        // Predicated region
        $region25: #{heart_gpt_forward.1} parent=11 // pred_check
          %p240 = pneg %p127
        $region26: #{heart_gpt_forward.1} parent=11 // pred_check_branch
          %242 = sbr.rel (%p240) target = $region28
        $region27: #{heart_gpt_forward.1} parent=11 // pred_region
          _
        $region28: #{heart_gpt_forward.1} parent=11 // pred_fallthru
          _
        // Predicated region
        $region29: #{heart_gpt_forward.1} parent=11 // pred_check
          %p243 = pneg %p148
        $region30: #{heart_gpt_forward.1} parent=11 // pred_check_branch
          %245 = sbr.rel (%p243) target = $region32
        $region31: #{heart_gpt_forward.1} parent=11 // pred_region
          _
        $region32: #{heart_gpt_forward.1} parent=11 // pred_fallthru
          _
        // Predicated region
        $region33: #{heart_gpt_forward.1} parent=11 // pred_check
          %p246 = pneg %p169
        $region34: #{heart_gpt_forward.1} parent=11 // pred_check_branch
          %248 = sbr.rel (%p246) target = $region36
        $region35: #{heart_gpt_forward.1} parent=11 // pred_region
          _
        $region36: #{heart_gpt_forward.1} parent=11 // pred_fallthru
          _
        // Predicated region
        $region37: #{heart_gpt_forward.1} parent=11 // pred_check
          %p249 = pneg %p190
        $region38: #{heart_gpt_forward.1} parent=11 // pred_check_branch
          %251 = sbr.rel (%p249) target = $region40
        $region39: #{heart_gpt_forward.1} parent=11 // pred_region
          _
        $region40: #{heart_gpt_forward.1} parent=11 // pred_fallthru
          _
      $region12: #{heart_gpt_forward.1} parent=5 // pred_fallthru
        _
      %p252 = scmp.lt.s32.totalorder %s17, 2
      // Predicated region
      $region41: #{heart_gpt_forward.1} parent=5 // pred_check
        %p253 = pneg %p252
      $region42: #{heart_gpt_forward.1} parent=5 // pred_check_branch
        %255 = sbr.rel (%p253) target = $region44
      $region43: #{heart_gpt_forward.1} parent=5 // pred_region
        // Predicated region
        $region45: #{heart_gpt_forward.1} parent=43 // pred_check
          %p256 = pneg %p37
        $region46: #{heart_gpt_forward.1} parent=43 // pred_check_branch
          %258 = sbr.rel (%p256) target = $region48
        $region47: #{heart_gpt_forward.1} parent=43 // pred_region
          %p259 = scmp.lt.s32.totalorder %s17, 1
          %s260 = scalar_select %p259, %s17, 1
          %s261 = smul.addr %s260, 2
          %s262 = smul.addr %s261, 8
          %s263 = scalar_lea.vmem %s0, %s262
        $region48: #{heart_gpt_forward.1} parent=43 // pred_fallthru
          _
      $region44: #{heart_gpt_forward.1} parent=5 // pred_fallthru
        _
      %p264 = scmp.le.s32.totalorder 1, %s17
      %p265 = scmp.lt.s32.totalorder %s17, 3
      %p266 = pnand %p264, %p265
      %p267 = pneg %p266
      // Predicated region
      $region49: #{heart_gpt_forward.1} parent=5 // pred_check
        _
      $region50: #{heart_gpt_forward.1} parent=5 // pred_check_branch
        %269 = sbr.rel (%p266) target = $region52
      $region51: #{heart_gpt_forward.1} parent=5 // pred_region
        %s270 = ssub.s32 %s17, 1
        %p271 = scmp.lt.s32.totalorder %s22, 1
        %s272 = scalar_select %p271, %s22, 1
        %s273 = smul.addr %s272, 2
        %s274 = smul.addr %s273, 8
        %s275 = scalar_lea.vmem %s0, %s274
        %p276 = pneg %p43
        %p277 = pneg %p40
        %p278 = pneg %p64
        %p279 = pneg %p61
        %p280 = pneg %p85
        %p281 = pneg %p82
        %p282 = pneg %p106
        %p283 = pneg %p103
        %p284 = pneg %p127
        %p285 = pneg %p124
        %p286 = pneg %p148
        %p287 = pneg %p145
        %p288 = pneg %p169
        %p289 = pneg %p166
        %p290 = pneg %p190
        %p291 = pneg %p187
        %p292 = pneg %p216
        %p293 = pneg %p213
        %s294 = sand.u32 %s203, 1
        %s295 = scalar_lea.sflag [#allocation4], %s294
        %s296 = sand.u32 %s203, 1
        %s297 = smul.addr %s296, 16
        %s298 = scalar_lea.vmem [#allocation3], %s297
        %p299 = scmp.lt.s32.totalorder %s22, 1
        %s300 = scalar_select %p299, %s22, 1
        %s301 = smul.addr %s300, 2
        %s302 = smul.addr %s301, 8
        %s303 = scalar_lea.vmem %s0, %s302
        %v305 = vlaneseq
        %v306 = vshrl.u32 %v305, 7
        %v307 = vadd.s32 %v306, 8
        %v308 = vlaneseq
        %v309 = vand.u32 %v308, 127
        %vm310 = vcmp.le.s32.totalorder %v309, %v306
        %vm311 = vcmp.le.s32.totalorder %v309, %v307
        %v312 = vsel %vm310, 0.0, -1e+30
        %v313 = vsel %vm311, 0.0, -1e+30
        %v314 = vld [vmem:[%s303] sm:$0xff]
        %v315 = vld [vmem:[%s303 + $0x8] sm:$0xff]
        %vm316 = vcmask 523264
        %317 = vst.msk [vmem:[#allocation2] sm:$0xff] %vm316, %v314
        %318 = vst.msk [vmem:[#allocation2 + $0x8] sm:$0xff] %vm316, %v315
        loop: start=0, step=1, limit=8
        $region53: #{heart_gpt_forward.1} parent=51 // loop_pre_header
          _
        $region54: #{heart_gpt_forward.1} parent=51 // loop_header
          %s320 = sphi 0, %s324
          %p321 = scmp.ge.s32.totalorder %s320, 8
        $region55: #{heart_gpt_forward.1} parent=51 // loop_header_branch
          %323 = sbr.rel (%p321) target = $region59
        $region56: #{heart_gpt_forward.1} parent=51 // loop_body
          %v325 = vld [vmem:[#allocation2] sm:$0xff]
          %v326 = vld [vmem:[#allocation2 + $0x8] sm:$0xff]
          %s327 = smul.u32 %s320, 2
          %s328 = smul.addr %s327, 8
          %s329 = scalar_lea.vmem %s1, %s328
          %v330 = vld [vmem:[%s329] sm:$0xff]
          %v331 = vld [vmem:[%s329 + $0x8] sm:$0xff]
          %v332 = vsel %vm316, %v325, 0.0
          %333 = vadd.xlane.f32.xlu0 %v332
          %v334 = vpop.xlane.xlu0 %333
          %v335 = vsel %vm316, %v326, 0.0
          %336 = vadd.xlane.f32.xlu0 %v335
          %v337 = vpop.xlane.xlu0 %336
          %v338 = vrcp.pop 64.0
          %v339 = vmul.f32 %v334, %v338
          %v340 = vmul.f32 %v337, %v338
          %v341 = vsub.f32 %v325, %v339
          %v342 = vsub.f32 %v326, %v340
          %v343 = vmul.f32 %v341, %v341
          %v344 = vmul.f32 %v342, %v342
          %v345 = vsel %vm316, %v343, 0.0
          %346 = vadd.xlane.f32.xlu0 %v345
          %v347 = vpop.xlane.xlu0 %346
          %v348 = vsel %vm316, %v344, 0.0
          %349 = vadd.xlane.f32.xlu0 %v348
          %v350 = vpop.xlane.xlu0 %349
          %v351 = vmul.f32 %v347, %v338
          %v352 = vmul.f32 %v350, %v338
          %v353 = vadd.f32 %v351, 1e-05
          %v354 = vadd.f32 %v352, 1e-05
          %v355 = vrsqrt.pop %v353
          %v356 = vrsqrt.pop %v354
          %v357 = vmul.f32 %v341, %v355
          %v358 = vmul.f32 %v342, %v356
          %v359 = vlaneseq
          %v360 = vshrl.u32 %v359, 7
          %v361 = vsub.s32 0, %v360
          %v362 = vrot.slane %v330, %v361
          %v363 = vmul.f32 %v357, %v362
          %v364 = vmul.f32 %v358, %v362
          %v365 = vlaneseq
          %v366 = vshrl.u32 %v365, 7
          %v367 = vsub.s32 1, %v366
          %v368 = vrot.slane %v330, %v367
          %v369 = vadd.f32 %v363, %v368
          %v370 = vadd.f32 %v364, %v368
          %v371 = vpack.c.bf16 %v370, %v369
          %s372 = smul.u32 %s320, 24
          %s373 = smul.addr %s372, 4
          %s374 = scalar_lea.vmem %s2, %s373
          %v375 = vld [vmem:[%s374] sm:$0xff]
          %v376 = vld [vmem:[%s374 + $0x8] sm:$0xf]
          %v377 = vld [vmem:[%s374 + $0xc] sm:$0xff]
          %v378 = vld [vmem:[%s374 + $0x14] sm:$0xf]
          %v379 = vld [vmem:[%s374 + $0x18] sm:$0xff]
          %v380 = vld [vmem:[%s374 + $0x20] sm:$0xf]
          %v381 = vld [vmem:[%s374 + $0x24] sm:$0xff]
          %v382 = vld [vmem:[%s374 + $0x2c] sm:$0xf]
          %v383 = vld [vmem:[%s374 + $0x30] sm:$0xff]
          %v384 = vld [vmem:[%s374 + $0x38] sm:$0xf]
          %v385 = vld [vmem:[%s374 + $0x3c] sm:$0xff]
          %v386 = vld [vmem:[%s374 + $0x44] sm:$0xf]
          %v387 = vld [vmem:[%s374 + $0x48] sm:$0xff]
          %v388 = vld [vmem:[%s374 + $0x50] sm:$0xf]
          %v389 = vld [vmem:[%s374 + $0x54] sm:$0xff]
          %v390 = vld [vmem:[%s374 + $0x5c] sm:$0xf]
          %v407 = vunpack.c.l.b16 %v375
          %v408 = vunpack.c.h.b16 %v375
          %v409 = vunpack.c.l.b16 %v376
          %v410 = vunpack.c.l.b16 %v377
          %v411 = vunpack.c.h.b16 %v377
          %v412 = vunpack.c.l.b16 %v378
          %v413 = vunpack.c.l.b16 %v379
          %v414 = vunpack.c.h.b16 %v379
          %v415 = vunpack.c.l.b16 %v380
          %v416 = vunpack.c.l.b16 %v381
          %v417 = vunpack.c.h.b16 %v381
          %v418 = vunpack.c.l.b16 %v382
          %v419 = vunpack.c.l.b16 %v383
          %v420 = vunpack.c.h.b16 %v383
          %v421 = vunpack.c.l.b16 %v384
          %v422 = vunpack.c.l.b16 %v385
          %v423 = vunpack.c.h.b16 %v385
          %v424 = vunpack.c.l.b16 %v386
          %v425 = vunpack.c.l.b16 %v387
          %v426 = vunpack.c.h.b16 %v387
          %v427 = vunpack.c.l.b16 %v388
          %v428 = vunpack.c.l.b16 %v389
          %v429 = vunpack.c.h.b16 %v389
          %v430 = vunpack.c.l.b16 %v390
          %v431 = vpack.c.b16 %v410, %v407
          %v432 = vpack.c.b16 %v411, %v408
          %v433 = vpack.c.b16 %v412, %v409
          %v434 = vpack.c.b16 %v416, %v413
          %v435 = vpack.c.b16 %v417, %v414
          %v436 = vpack.c.b16 %v418, %v415
          %v437 = vpack.c.b16 %v422, %v419
          %v438 = vpack.c.b16 %v423, %v420
          %v439 = vpack.c.b16 %v424, %v421
          %v440 = vpack.c.b16 %v428, %v425
          %v441 = vpack.c.b16 %v429, %v426
          %v442 = vpack.c.b16 %v430, %v427
          %v456 = vsel %vm316, %v371, 0
          %458 = vmatprep.subr.bf16.mxu0 0
          %459 = vmatpush1.bf16.msra.mxu0 0
          %460 = vmatprep.subr.bf16.mxu0 0
          %461 = vmatpush1.bf16.msra.mxu0 0
          %462 = vmatprep.subr.bf16.mxu0 0
          %463 = vmatpush1.bf16.msra.mxu0 0
          %464 = vmatprep.subr.bf16.mxu0 0
          %465 = vmatpush1.bf16.msra.mxu0 0
          %466 = vmatprep.subr.bf16.mxu0 %v441
          %467 = vmatpush1.bf16.msra.mxu0 %v440
          %468 = vmatprep.subr.bf16.mxu0 %v438
          %469 = vmatpush1.bf16.msra.mxu0 %v437
          %470 = vmatprep.subr.bf16.mxu0 %v435
          %471 = vmatpush1.bf16.msra.mxu0 %v434
          %472 = vmatprep.subr.bf16.mxu0 %v432
          %473 = vmatpush1.bf16.msra.mxu0 %v431
          %474 = vmatprep.subr.bf16.mxu0 0
          %475 = vmatpush2.bf16.msra.mxu0 0
          %476 = vmatprep.subr.bf16.mxu0 0
          %477 = vmatpush2.bf16.msra.mxu0 0
          %478 = vmatprep.subr.bf16.mxu0 0
          %479 = vmatpush2.bf16.msra.mxu0 0
          %480 = vmatprep.subr.bf16.mxu0 0
          %481 = vmatpush2.bf16.msra.mxu0 0
          %482 = vmatprep.subr.bf16.mxu0 0
          %483 = vmatpush2.bf16.msra.mxu0 0
          %484 = vmatprep.subr.bf16.mxu0 0
          %485 = vmatpush2.bf16.msra.mxu0 0
          %486 = vmatprep.subr.bf16.mxu0 0
          %487 = vmatpush2.bf16.msra.mxu0 0
          %488 = vmatprep.subr.bf16.mxu0 0
          %489 = vmatpush2.bf16.msra.mxu0 0
          %490 = vmatprep.mubr.bf16.mxu0 0
          %491 = vmatmul.mubr.bf16.gmra.mxu0 %v456
          %v492 = vpop.f32.mrf.mxu0
          %v493 = vadd.f32 0.0, %v492
          %v494 = vpop.f32.mrf.mxu0
          %v495 = vadd.f32 0.0, %v494
          %v496 = vpop.f32.mrf.mxu0
          %v497 = vadd.f32 0.0, %v496
          %v498 = vpop.f32.mrf.mxu0
          %v499 = vadd.f32 0.0, %v498
          %500 = vdwg.mxu0
          %501 = vmatprep.subr.bf16.mxu0 0
          %502 = vmatpush1.bf16.msra.mxu0 0
          %503 = vmatprep.subr.bf16.mxu0 0
          %504 = vmatpush1.bf16.msra.mxu0 0
          %505 = vmatprep.subr.bf16.mxu0 0
          %506 = vmatpush1.bf16.msra.mxu0 0
          %507 = vmatprep.subr.bf16.mxu0 0
          %508 = vmatpush1.bf16.msra.mxu0 0
          %509 = vmatprep.subr.bf16.mxu0 0
          %510 = vmatpush1.bf16.msra.mxu0 %v442
          %511 = vmatprep.subr.bf16.mxu0 0
          %512 = vmatpush1.bf16.msra.mxu0 %v439
          %513 = vmatprep.subr.bf16.mxu0 0
          %514 = vmatpush1.bf16.msra.mxu0 %v436
          %515 = vmatprep.subr.bf16.mxu0 0
          %516 = vmatpush1.bf16.msra.mxu0 %v433
          %517 = vmatprep.subr.bf16.mxu0 0
          %518 = vmatpush2.bf16.msra.mxu0 0
          %519 = vmatprep.subr.bf16.mxu0 0
          %520 = vmatpush2.bf16.msra.mxu0 0
          %521 = vmatprep.subr.bf16.mxu0 0
          %522 = vmatpush2.bf16.msra.mxu0 0
          %523 = vmatprep.subr.bf16.mxu0 0
          %524 = vmatpush2.bf16.msra.mxu0 0
          %525 = vmatprep.subr.bf16.mxu0 0
          %526 = vmatpush2.bf16.msra.mxu0 0
          %527 = vmatprep.subr.bf16.mxu0 0
          %528 = vmatpush2.bf16.msra.mxu0 0
          %529 = vmatprep.subr.bf16.mxu0 0
          %530 = vmatpush2.bf16.msra.mxu0 0
          %531 = vmatprep.subr.bf16.mxu0 0
          %532 = vmatpush2.bf16.msra.mxu0 0
          %533 = vmatprep.mubr.bf16.mxu0 0
          %534 = vmatmul.mubr.bf16.gmra.mxu0 %v456
          %v535 = vpop.f32.mrf.mxu0
          %v536 = vadd.f32 0.0, %v535
          %v537 = vpop.f32.mrf.mxu0
          %v538 = vpop.f32.mrf.mxu0
          %v539 = vadd.f32 0.0, %v538
          %v540 = vpop.f32.mrf.mxu0
          %541 = vdwg.mxu0
          %v542 = vpack.c.bf16 %v497, %v493
          %v543 = vpack.c.bf16 %v499, %v495
          %v544 = vpack.c.bf16 %v539, %v536
          %vm545 = vcmask 64512
          %v547 = vsel %vm545, %v542, 0
          %v550 = vsel %vm545, %v543, 0
          %552 = vmatprep.subr.bf16.mxu0 0
          %553 = vmatpush1.bf16.xpose.msra.mxu0 0
          %554 = vmatprep.subr.bf16.mxu0 0
          %555 = vmatpush1.bf16.xpose.msra.mxu0 0
          %556 = vmatprep.subr.bf16.mxu0 0
          %557 = vmatpush1.bf16.xpose.msra.mxu0 0
          %558 = vmatprep.subr.bf16.mxu0 0
          %559 = vmatpush1.bf16.xpose.msra.mxu0 0
          %560 = vmatprep.subr.bf16.mxu0 0
          %561 = vmatpush1.bf16.xpose.msra.mxu0 0
          %562 = vmatprep.subr.bf16.mxu0 0
          %563 = vmatpush1.bf16.xpose.msra.mxu0 0
          %564 = vmatprep.subr.bf16.mxu0 0
          %565 = vmatpush1.bf16.xpose.msra.mxu0 0
          %566 = vmatprep.subr.bf16.mxu0 0
          %567 = vmatpush1.bf16.xpose.msra.mxu0 %v550
          %568 = vmatprep.subr.bf16.mxu0 0
          %569 = vmatpush2.bf16.xpose.msra.mxu0 0
          %570 = vmatprep.subr.bf16.mxu0 0
          %571 = vmatpush2.bf16.xpose.msra.mxu0 0
          %572 = vmatprep.subr.bf16.mxu0 0
          %573 = vmatpush2.bf16.xpose.msra.mxu0 0
          %574 = vmatprep.subr.bf16.mxu0 0
          %575 = vmatpush2.bf16.xpose.msra.mxu0 0
          %576 = vmatprep.subr.bf16.mxu0 0
          %577 = vmatpush2.bf16.xpose.msra.mxu0 0
          %578 = vmatprep.subr.bf16.mxu0 0
          %579 = vmatpush2.bf16.xpose.msra.mxu0 0
          %580 = vmatprep.subr.bf16.mxu0 0
          %581 = vmatpush2.bf16.xpose.msra.mxu0 0
          %582 = vmatprep.subr.bf16.mxu0 0
          %583 = vmatpush2.bf16.xpose.msra.mxu0 0
          %584 = vmatprep.mubr.bf16.mxu0 0
          %585 = vmatmul.mubr.bf16.gmra.mxu0 %v547
          %v586 = vpop.f32.mrf.mxu0
          %v587 = vadd.f32 %v312, %v586
          %v588 = vpop.f32.mrf.mxu0
          %v589 = vpop.f32.mrf.mxu0
          %v590 = vadd.f32 %v313, %v589
          %v591 = vpop.f32.mrf.mxu0
          %592 = vdwg.mxu0
          %vm593 = vcmask 130048
          %v594 = vsel %vm593, %v587, -inf
          %595 = vmax.xlane.f32.xlu0 %v594
          %v596 = vpop.xlane.xlu0 %595
          %v597 = vsel %vm593, %v590, -inf
          %598 = vmax.xlane.f32.xlu0 %v597
          %v599 = vpop.xlane.xlu0 %598
          %v600 = vsub.f32 %v587, %v596
          %v601 = vsub.f32 %v590, %v599
          %v602 = vmul.f32 %v600, 1.442695
          %v603 = vpow.pop %v602
          %v604 = vmul.f32 %v601, 1.442695
          %v605 = vpow.pop %v604
          %v606 = vsel %vm593, %v603, 0.0
          %607 = vadd.xlane.f32.xlu0 %v606
          %v608 = vpop.xlane.xlu0 %607
          %v609 = vsel %vm593, %v605, 0.0
          %610 = vadd.xlane.f32.xlu0 %v609
          %v611 = vpop.xlane.xlu0 %610
          %v612 = vrcp.pop %v608
          %v613 = vrcp.pop %v611
          %v614 = vmul.f32 %v603, %v612
          %v615 = vmul.f32 %v605, %v613
          %v616 = vpack.c.bf16 %v615, %v614
          %v618 = vsel %vm593, %v616, 0
          %620 = vmatprep.subr.bf16.mxu0 0
          %621 = vmatpush1.bf16.msra.mxu0 0
          %622 = vmatprep.subr.bf16.mxu0 0
          %623 = vmatpush1.bf16.msra.mxu0 0
          %624 = vmatprep.subr.bf16.mxu0 0
          %625 = vmatpush1.bf16.msra.mxu0 0
          %626 = vmatprep.subr.bf16.mxu0 0
          %627 = vmatpush1.bf16.msra.mxu0 0
          %628 = vmatprep.subr.bf16.mxu0 0
          %629 = vmatpush1.bf16.msra.mxu0 0
          %630 = vmatprep.subr.bf16.mxu0 0
          %631 = vmatpush1.bf16.msra.mxu0 0
          %632 = vmatprep.subr.bf16.mxu0 0
          %633 = vmatpush1.bf16.msra.mxu0 0
          %634 = vmatprep.subr.bf16.mxu0 0
          %635 = vmatpush1.bf16.msra.mxu0 %v544
          %636 = vmatprep.subr.bf16.mxu0 0
          %637 = vmatpush2.bf16.msra.mxu0 0
          %638 = vmatprep.subr.bf16.mxu0 0
          %639 = vmatpush2.bf16.msra.mxu0 0
          %640 = vmatprep.subr.bf16.mxu0 0
          %641 = vmatpush2.bf16.msra.mxu0 0
          %642 = vmatprep.subr.bf16.mxu0 0
          %643 = vmatpush2.bf16.msra.mxu0 0
          %644 = vmatprep.subr.bf16.mxu0 0
          %645 = vmatpush2.bf16.msra.mxu0 0
          %646 = vmatprep.subr.bf16.mxu0 0
          %647 = vmatpush2.bf16.msra.mxu0 0
          %648 = vmatprep.subr.bf16.mxu0 0
          %649 = vmatpush2.bf16.msra.mxu0 0
          %650 = vmatprep.subr.bf16.mxu0 0
          %651 = vmatpush2.bf16.msra.mxu0 0
          %652 = vmatprep.mubr.bf16.mxu0 0
          %653 = vmatmul.mubr.bf16.gmra.mxu0 %v618
          %v654 = vpop.f32.mrf.mxu0
          %v655 = vadd.f32 0.0, %v654
          %v656 = vpop.f32.mrf.mxu0
          %v657 = vpop.f32.mrf.mxu0
          %v658 = vadd.f32 0.0, %v657
          %v659 = vpop.f32.mrf.mxu0
          %660 = vdwg.mxu0
          %662 = vrot.lane.b32.xlu0 %v542, 120
          %v663 = vpop.permute.xlu0 %662
          %665 = vrot.lane.b32.xlu0 %v543, 120
          %v666 = vpop.permute.xlu0 %665
          %v668 = vsel %vm545, %v663, 0
          %v671 = vsel %vm545, %v666, 0
          %673 = vmatprep.subr.bf16.mxu0 0
          %674 = vmatpush1.bf16.xpose.msra.mxu0 0
          %675 = vmatprep.subr.bf16.mxu0 0
          %676 = vmatpush1.bf16.xpose.msra.mxu0 0
          %677 = vmatprep.subr.bf16.mxu0 0
          %678 = vmatpush1.bf16.xpose.msra.mxu0 0
          %679 = vmatprep.subr.bf16.mxu0 0
          %680 = vmatpush1.bf16.xpose.msra.mxu0 0
          %681 = vmatprep.subr.bf16.mxu0 0
          %682 = vmatpush1.bf16.xpose.msra.mxu0 0
          %683 = vmatprep.subr.bf16.mxu0 0
          %684 = vmatpush1.bf16.xpose.msra.mxu0 0
          %685 = vmatprep.subr.bf16.mxu0 0
          %686 = vmatpush1.bf16.xpose.msra.mxu0 0
          %687 = vmatprep.subr.bf16.mxu0 0
          %688 = vmatpush1.bf16.xpose.msra.mxu0 %v671
          %689 = vmatprep.subr.bf16.mxu0 0
          %690 = vmatpush2.bf16.xpose.msra.mxu0 0
          %691 = vmatprep.subr.bf16.mxu0 0
          %692 = vmatpush2.bf16.xpose.msra.mxu0 0
          %693 = vmatprep.subr.bf16.mxu0 0
          %694 = vmatpush2.bf16.xpose.msra.mxu0 0
          %695 = vmatprep.subr.bf16.mxu0 0
          %696 = vmatpush2.bf16.xpose.msra.mxu0 0
          %697 = vmatprep.subr.bf16.mxu0 0
          %698 = vmatpush2.bf16.xpose.msra.mxu0 0
          %699 = vmatprep.subr.bf16.mxu0 0
          %700 = vmatpush2.bf16.xpose.msra.mxu0 0
          %701 = vmatprep.subr.bf16.mxu0 0
          %702 = vmatpush2.bf16.xpose.msra.mxu0 0
          %703 = vmatprep.subr.bf16.mxu0 0
          %704 = vmatpush2.bf16.xpose.msra.mxu0 0
          %705 = vmatprep.mubr.bf16.mxu0 0
          %706 = vmatmul.mubr.bf16.gmra.mxu0 %v668
          %v707 = vpop.f32.mrf.mxu0
          %v708 = vadd.f32 %v312, %v707
          %v709 = vpop.f32.mrf.mxu0
          %v710 = vpop.f32.mrf.mxu0
          %v711 = vadd.f32 %v313, %v710
          %v712 = vpop.f32.mrf.mxu0
          %713 = vdwg.mxu0
          %v714 = vsel %vm593, %v708, -inf
          %715 = vmax.xlane.f32.xlu0 %v714
          %v716 = vpop.xlane.xlu0 %715
          %v717 = vsel %vm593, %v711, -inf
          %718 = vmax.xlane.f32.xlu0 %v717
          %v719 = vpop.xlane.xlu0 %718
          %v720 = vsub.f32 %v708, %v716
          %v721 = vsub.f32 %v711, %v719
          %v722 = vmul.f32 %v720, 1.442695
          %v723 = vpow.pop %v722
          %v724 = vmul.f32 %v721, 1.442695
          %v725 = vpow.pop %v724
          %v726 = vsel %vm593, %v723, 0.0
          %727 = vadd.xlane.f32.xlu0 %v726
          %v728 = vpop.xlane.xlu0 %727
          %v729 = vsel %vm593, %v725, 0.0
          %730 = vadd.xlane.f32.xlu0 %v729
          %v731 = vpop.xlane.xlu0 %730
          %v732 = vrcp.pop %v728
          %v733 = vrcp.pop %v731
          %v734 = vmul.f32 %v723, %v732
          %v735 = vmul.f32 %v725, %v733
          %v736 = vpack.c.bf16 %v735, %v734
          %738 = vrot.lane.b32.xlu0 %v544, 120
          %v739 = vpop.permute.xlu0 %738
          %v742 = vsel %vm593, %v736, 0
          %744 = vmatprep.subr.bf16.mxu0 0
          %745 = vmatpush1.bf16.msra.mxu0 0
          %746 = vmatprep.subr.bf16.mxu0 0
          %747 = vmatpush1.bf16.msra.mxu0 0
          %748 = vmatprep.subr.bf16.mxu0 0
          %749 = vmatpush1.bf16.msra.mxu0 0
          %750 = vmatprep.subr.bf16.mxu0 0
          %751 = vmatpush1.bf16.msra.mxu0 0
          %752 = vmatprep.subr.bf16.mxu0 0
          %753 = vmatpush1.bf16.msra.mxu0 0
          %754 = vmatprep.subr.bf16.mxu0 0
          %755 = vmatpush1.bf16.msra.mxu0 0
          %756 = vmatprep.subr.bf16.mxu0 0
          %757 = vmatpush1.bf16.msra.mxu0 0
          %758 = vmatprep.subr.bf16.mxu0 0
          %759 = vmatpush1.bf16.msra.mxu0 %v739
          %760 = vmatprep.subr.bf16.mxu0 0
          %761 = vmatpush2.bf16.msra.mxu0 0
          %762 = vmatprep.subr.bf16.mxu0 0
          %763 = vmatpush2.bf16.msra.mxu0 0
          %764 = vmatprep.subr.bf16.mxu0 0
          %765 = vmatpush2.bf16.msra.mxu0 0
          %766 = vmatprep.subr.bf16.mxu0 0
          %767 = vmatpush2.bf16.msra.mxu0 0
          %768 = vmatprep.subr.bf16.mxu0 0
          %769 = vmatpush2.bf16.msra.mxu0 0
          %770 = vmatprep.subr.bf16.mxu0 0
          %771 = vmatpush2.bf16.msra.mxu0 0
          %772 = vmatprep.subr.bf16.mxu0 0
          %773 = vmatpush2.bf16.msra.mxu0 0
          %774 = vmatprep.subr.bf16.mxu0 0
          %775 = vmatpush2.bf16.msra.mxu0 0
          %776 = vmatprep.mubr.bf16.mxu0 0
          %777 = vmatmul.mubr.bf16.gmra.mxu0 %v742
          %v778 = vpop.f32.mrf.mxu0
          %v779 = vadd.f32 0.0, %v778
          %v780 = vpop.f32.mrf.mxu0
          %v781 = vpop.f32.mrf.mxu0
          %v782 = vadd.f32 0.0, %v781
          %v783 = vpop.f32.mrf.mxu0
          %784 = vdwg.mxu0
          %785 = vrot.lane.b32.xlu0 %v542, 112
          %v786 = vpop.permute.xlu0 %785
          %787 = vrot.lane.b32.xlu0 %v543, 112
          %v788 = vpop.permute.xlu0 %787
          %v790 = vsel %vm545, %v786, 0
          %v793 = vsel %vm545, %v788, 0
          %795 = vmatprep.subr.bf16.mxu0 0
          %796 = vmatpush1.bf16.xpose.msra.mxu0 0
          %797 = vmatprep.subr.bf16.mxu0 0
          %798 = vmatpush1.bf16.xpose.msra.mxu0 0
          %799 = vmatprep.subr.bf16.mxu0 0
          %800 = vmatpush1.bf16.xpose.msra.mxu0 0
          %801 = vmatprep.subr.bf16.mxu0 0
          %802 = vmatpush1.bf16.xpose.msra.mxu0 0
          %803 = vmatprep.subr.bf16.mxu0 0
          %804 = vmatpush1.bf16.xpose.msra.mxu0 0
          %805 = vmatprep.subr.bf16.mxu0 0
          %806 = vmatpush1.bf16.xpose.msra.mxu0 0
          %807 = vmatprep.subr.bf16.mxu0 0
          %808 = vmatpush1.bf16.xpose.msra.mxu0 0
          %809 = vmatprep.subr.bf16.mxu0 0
          %810 = vmatpush1.bf16.xpose.msra.mxu0 %v793
          %811 = vmatprep.subr.bf16.mxu0 0
          %812 = vmatpush2.bf16.xpose.msra.mxu0 0
          %813 = vmatprep.subr.bf16.mxu0 0
          %814 = vmatpush2.bf16.xpose.msra.mxu0 0
          %815 = vmatprep.subr.bf16.mxu0 0
          %816 = vmatpush2.bf16.xpose.msra.mxu0 0
          %817 = vmatprep.subr.bf16.mxu0 0
          %818 = vmatpush2.bf16.xpose.msra.mxu0 0
          %819 = vmatprep.subr.bf16.mxu0 0
          %820 = vmatpush2.bf16.xpose.msra.mxu0 0
          %821 = vmatprep.subr.bf16.mxu0 0
          %822 = vmatpush2.bf16.xpose.msra.mxu0 0
          %823 = vmatprep.subr.bf16.mxu0 0
          %824 = vmatpush2.bf16.xpose.msra.mxu0 0
          %825 = vmatprep.subr.bf16.mxu0 0
          %826 = vmatpush2.bf16.xpose.msra.mxu0 0
          %827 = vmatprep.mubr.bf16.mxu0 0
          %828 = vmatmul.mubr.bf16.gmra.mxu0 %v790
          %v829 = vpop.f32.mrf.mxu0
          %v830 = vadd.f32 %v312, %v829
          %v831 = vpop.f32.mrf.mxu0
          %v832 = vpop.f32.mrf.mxu0
          %v833 = vadd.f32 %v313, %v832
          %v834 = vpop.f32.mrf.mxu0
          %835 = vdwg.mxu0
          %v836 = vsel %vm593, %v830, -inf
          %837 = vmax.xlane.f32.xlu0 %v836
          %v838 = vpop.xlane.xlu0 %837
          %v839 = vsel %vm593, %v833, -inf
          %840 = vmax.xlane.f32.xlu0 %v839
          %v841 = vpop.xlane.xlu0 %840
          %v842 = vsub.f32 %v830, %v838
          %v843 = vsub.f32 %v833, %v841
          %v844 = vmul.f32 %v842, 1.442695
          %v845 = vpow.pop %v844
          %v846 = vmul.f32 %v843, 1.442695
          %v847 = vpow.pop %v846
          %v848 = vsel %vm593, %v845, 0.0
          %849 = vadd.xlane.f32.xlu0 %v848
          %v850 = vpop.xlane.xlu0 %849
          %v851 = vsel %vm593, %v847, 0.0
          %852 = vadd.xlane.f32.xlu0 %v851
          %v853 = vpop.xlane.xlu0 %852
          %v854 = vrcp.pop %v850
          %v855 = vrcp.pop %v853
          %v856 = vmul.f32 %v845, %v854
          %v857 = vmul.f32 %v847, %v855
          %v858 = vpack.c.bf16 %v857, %v856
          %859 = vrot.lane.b32.xlu0 %v544, 112
          %v860 = vpop.permute.xlu0 %859
          %v863 = vsel %vm593, %v858, 0
          %865 = vmatprep.subr.bf16.mxu0 0
          %866 = vmatpush1.bf16.msra.mxu0 0
          %867 = vmatprep.subr.bf16.mxu0 0
          %868 = vmatpush1.bf16.msra.mxu0 0
          %869 = vmatprep.subr.bf16.mxu0 0
          %870 = vmatpush1.bf16.msra.mxu0 0
          %871 = vmatprep.subr.bf16.mxu0 0
          %872 = vmatpush1.bf16.msra.mxu0 0
          %873 = vmatprep.subr.bf16.mxu0 0
          %874 = vmatpush1.bf16.msra.mxu0 0
          %875 = vmatprep.subr.bf16.mxu0 0
          %876 = vmatpush1.bf16.msra.mxu0 0
          %877 = vmatprep.subr.bf16.mxu0 0
          %878 = vmatpush1.bf16.msra.mxu0 0
          %879 = vmatprep.subr.bf16.mxu0 0
          %880 = vmatpush1.bf16.msra.mxu0 %v860
          %881 = vmatprep.subr.bf16.mxu0 0
          %882 = vmatpush2.bf16.msra.mxu0 0
          %883 = vmatprep.subr.bf16.mxu0 0
          %884 = vmatpush2.bf16.msra.mxu0 0
          %885 = vmatprep.subr.bf16.mxu0 0
          %886 = vmatpush2.bf16.msra.mxu0 0
          %887 = vmatprep.subr.bf16.mxu0 0
          %888 = vmatpush2.bf16.msra.mxu0 0
          %889 = vmatprep.subr.bf16.mxu0 0
          %890 = vmatpush2.bf16.msra.mxu0 0
          %891 = vmatprep.subr.bf16.mxu0 0
          %892 = vmatpush2.bf16.msra.mxu0 0
          %893 = vmatprep.subr.bf16.mxu0 0
          %894 = vmatpush2.bf16.msra.mxu0 0
          %895 = vmatprep.subr.bf16.mxu0 0
          %896 = vmatpush2.bf16.msra.mxu0 0
          %897 = vmatprep.mubr.bf16.mxu0 0
          %898 = vmatmul.mubr.bf16.gmra.mxu0 %v863
          %v899 = vpop.f32.mrf.mxu0
          %v900 = vadd.f32 0.0, %v899
          %v901 = vpop.f32.mrf.mxu0
          %v902 = vpop.f32.mrf.mxu0
          %v903 = vadd.f32 0.0, %v902
          %v904 = vpop.f32.mrf.mxu0
          %905 = vdwg.mxu0
          %906 = vrot.lane.b32.xlu0 %v542, 104
          %v907 = vpop.permute.xlu0 %906
          %908 = vrot.lane.b32.xlu0 %v543, 104
          %v909 = vpop.permute.xlu0 %908
          %v911 = vsel %vm545, %v907, 0
          %v914 = vsel %vm545, %v909, 0
          %916 = vmatprep.subr.bf16.mxu0 0
          %917 = vmatpush1.bf16.xpose.msra.mxu0 0
          %918 = vmatprep.subr.bf16.mxu0 0
          %919 = vmatpush1.bf16.xpose.msra.mxu0 0
          %920 = vmatprep.subr.bf16.mxu0 0
          %921 = vmatpush1.bf16.xpose.msra.mxu0 0
          %922 = vmatprep.subr.bf16.mxu0 0
          %923 = vmatpush1.bf16.xpose.msra.mxu0 0
          %924 = vmatprep.subr.bf16.mxu0 0
          %925 = vmatpush1.bf16.xpose.msra.mxu0 0
          %926 = vmatprep.subr.bf16.mxu0 0
          %927 = vmatpush1.bf16.xpose.msra.mxu0 0
          %928 = vmatprep.subr.bf16.mxu0 0
          %929 = vmatpush1.bf16.xpose.msra.mxu0 0
          %930 = vmatprep.subr.bf16.mxu0 0
          %931 = vmatpush1.bf16.xpose.msra.mxu0 %v914
          %932 = vmatprep.subr.bf16.mxu0 0
          %933 = vmatpush2.bf16.xpose.msra.mxu0 0
          %934 = vmatprep.subr.bf16.mxu0 0
          %935 = vmatpush2.bf16.xpose.msra.mxu0 0
          %936 = vmatprep.subr.bf16.mxu0 0
          %937 = vmatpush2.bf16.xpose.msra.mxu0 0
          %938 = vmatprep.subr.bf16.mxu0 0
          %939 = vmatpush2.bf16.xpose.msra.mxu0 0
          %940 = vmatprep.subr.bf16.mxu0 0
          %941 = vmatpush2.bf16.xpose.msra.mxu0 0
          %942 = vmatprep.subr.bf16.mxu0 0
          %943 = vmatpush2.bf16.xpose.msra.mxu0 0
          %944 = vmatprep.subr.bf16.mxu0 0
          %945 = vmatpush2.bf16.xpose.msra.mxu0 0
          %946 = vmatprep.subr.bf16.mxu0 0
          %947 = vmatpush2.bf16.xpose.msra.mxu0 0
          %948 = vmatprep.mubr.bf16.mxu0 0
          %949 = vmatmul.mubr.bf16.gmra.mxu0 %v911
          %v950 = vpop.f32.mrf.mxu0
          %v951 = vadd.f32 %v312, %v950
          %v952 = vpop.f32.mrf.mxu0
          %v953 = vpop.f32.mrf.mxu0
          %v954 = vadd.f32 %v313, %v953
          %v955 = vpop.f32.mrf.mxu0
          %956 = vdwg.mxu0
          %v957 = vsel %vm593, %v951, -inf
          %958 = vmax.xlane.f32.xlu0 %v957
          %v959 = vpop.xlane.xlu0 %958
          %v960 = vsel %vm593, %v954, -inf
          %961 = vmax.xlane.f32.xlu0 %v960
          %v962 = vpop.xlane.xlu0 %961
          %v963 = vsub.f32 %v951, %v959
          %v964 = vsub.f32 %v954, %v962
          %v965 = vmul.f32 %v963, 1.442695
          %v966 = vpow.pop %v965
          %v967 = vmul.f32 %v964, 1.442695
          %v968 = vpow.pop %v967
          %v969 = vsel %vm593, %v966, 0.0
          %970 = vadd.xlane.f32.xlu0 %v969
          %v971 = vpop.xlane.xlu0 %970
          %v972 = vsel %vm593, %v968, 0.0
          %973 = vadd.xlane.f32.xlu0 %v972
          %v974 = vpop.xlane.xlu0 %973
          %v975 = vrcp.pop %v971
          %v976 = vrcp.pop %v974
          %v977 = vmul.f32 %v966, %v975
          %v978 = vmul.f32 %v968, %v976
          %v979 = vpack.c.bf16 %v978, %v977
          %980 = vrot.lane.b32.xlu0 %v544, 104
          %v981 = vpop.permute.xlu0 %980
          %v984 = vsel %vm593, %v979, 0
          %986 = vmatprep.subr.bf16.mxu0 0
          %987 = vmatpush1.bf16.msra.mxu0 0
          %988 = vmatprep.subr.bf16.mxu0 0
          %989 = vmatpush1.bf16.msra.mxu0 0
          %990 = vmatprep.subr.bf16.mxu0 0
          %991 = vmatpush1.bf16.msra.mxu0 0
          %992 = vmatprep.subr.bf16.mxu0 0
          %993 = vmatpush1.bf16.msra.mxu0 0
          %994 = vmatprep.subr.bf16.mxu0 0
          %995 = vmatpush1.bf16.msra.mxu0 0
          %996 = vmatprep.subr.bf16.mxu0 0
          %997 = vmatpush1.bf16.msra.mxu0 0
          %998 = vmatprep.subr.bf16.mxu0 0
          %999 = vmatpush1.bf16.msra.mxu0 0
          %1000 = vmatprep.subr.bf16.mxu0 0
          %1001 = vmatpush1.bf16.msra.mxu0 %v981
          %1002 = vmatprep.subr.bf16.mxu0 0
          %1003 = vmatpush2.bf16.msra.mxu0 0
          %1004 = vmatprep.subr.bf16.mxu0 0
          %1005 = vmatpush2.bf16.msra.mxu0 0
          %1006 = vmatprep.subr.bf16.mxu0 0
          %1007 = vmatpush2.bf16.msra.mxu0 0
          %1008 = vmatprep.subr.bf16.mxu0 0
          %1009 = vmatpush2.bf16.msra.mxu0 0
          %1010 = vmatprep.subr.bf16.mxu0 0
          %1011 = vmatpush2.bf16.msra.mxu0 0
          %1012 = vmatprep.subr.bf16.mxu0 0
          %1013 = vmatpush2.bf16.msra.mxu0 0
          %1014 = vmatprep.subr.bf16.mxu0 0
          %1015 = vmatpush2.bf16.msra.mxu0 0
          %1016 = vmatprep.subr.bf16.mxu0 0
          %1017 = vmatpush2.bf16.msra.mxu0 0
          %1018 = vmatprep.mubr.bf16.mxu0 0
          %1019 = vmatmul.mubr.bf16.gmra.mxu0 %v984
          %v1020 = vpop.f32.mrf.mxu0
          %v1021 = vadd.f32 0.0, %v1020
          %v1022 = vpop.f32.mrf.mxu0
          %v1023 = vpop.f32.mrf.mxu0
          %v1024 = vadd.f32 0.0, %v1023
          %v1025 = vpop.f32.mrf.mxu0
          %1026 = vdwg.mxu0
          %1027 = vrot.lane.b32.xlu0 %v542, 96
          %v1028 = vpop.permute.xlu0 %1027
          %1029 = vrot.lane.b32.xlu0 %v543, 96
          %v1030 = vpop.permute.xlu0 %1029
          %v1032 = vsel %vm545, %v1028, 0
          %v1035 = vsel %vm545, %v1030, 0
          %1037 = vmatprep.subr.bf16.mxu0 0
          %1038 = vmatpush1.bf16.xpose.msra.mxu0 0
          %1039 = vmatprep.subr.bf16.mxu0 0
          %1040 = vmatpush1.bf16.xpose.msra.mxu0 0
          %1041 = vmatprep.subr.bf16.mxu0 0
          %1042 = vmatpush1.bf16.xpose.msra.mxu0 0
          %1043 = vmatprep.subr.bf16.mxu0 0
          %1044 = vmatpush1.bf16.xpose.msra.mxu0 0
          %1045 = vmatprep.subr.bf16.mxu0 0
          %1046 = vmatpush1.bf16.xpose.msra.mxu0 0
          %1047 = vmatprep.subr.bf16.mxu0 0
          %1048 = vmatpush1.bf16.xpose.msra.mxu0 0
          %1049 = vmatprep.subr.bf16.mxu0 0
          %1050 = vmatpush1.bf16.xpose.msra.mxu0 0
          %1051 = vmatprep.subr.bf16.mxu0 0
          %1052 = vmatpush1.bf16.xpose.msra.mxu0 %v1035
          %1053 = vmatprep.subr.bf16.mxu0 0
          %1054 = vmatpush2.bf16.xpose.msra.mxu0 0
          %1055 = vmatprep.subr.bf16.mxu0 0
          %1056 = vmatpush2.bf16.xpose.msra.mxu0 0
          %1057 = vmatprep.subr.bf16.mxu0 0
          %1058 = vmatpush2.bf16.xpose.msra.mxu0 0
          %1059 = vmatprep.subr.bf16.mxu0 0
          %1060 = vmatpush2.bf16.xpose.msra.mxu0 0
          %1061 = vmatprep.subr.bf16.mxu0 0
          %1062 = vmatpush2.bf16.xpose.msra.mxu0 0
          %1063 = vmatprep.subr.bf16.mxu0 0
          %1064 = vmatpush2.bf16.xpose.msra.mxu0 0
          %1065 = vmatprep.subr.bf16.mxu0 0
          %1066 = vmatpush2.bf16.xpose.msra.mxu0 0
          %1067 = vmatprep.subr.bf16.mxu0 0
          %1068 = vmatpush2.bf16.xpose.msra.mxu0 0
          %1069 = vmatprep.mubr.bf16.mxu0 0
          %1070 = vmatmul.mubr.bf16.gmra.mxu0 %v1032
          %v1071 = vpop.f32.mrf.mxu0
          %v1072 = vadd.f32 %v312, %v1071
          %v1073 = vpop.f32.mrf.mxu0
          %v1074 = vpop.f32.mrf.mxu0
          %v1075 = vadd.f32 %v313, %v1074
          %v1076 = vpop.f32.mrf.mxu0
          %1077 = vdwg.mxu0
          %v1078 = vsel %vm593, %v1072, -inf
          %1079 = vmax.xlane.f32.xlu0 %v1078
          %v1080 = vpop.xlane.xlu0 %1079
          %v1081 = vsel %vm593, %v1075, -inf
          %1082 = vmax.xlane.f32.xlu0 %v1081
          %v1083 = vpop.xlane.xlu0 %1082
          %v1084 = vsub.f32 %v1072, %v1080
          %v1085 = vsub.f32 %v1075, %v1083
          %v1086 = vmul.f32 %v1084, 1.442695
          %v1087 = vpow.pop %v1086
          %v1088 = vmul.f32 %v1085, 1.442695
          %v1089 = vpow.pop %v1088
          %v1090 = vsel %vm593, %v1087, 0.0
          %1091 = vadd.xlane.f32.xlu0 %v1090
          %v1092 = vpop.xlane.xlu0 %1091
          %v1093 = vsel %vm593, %v1089, 0.0
          %1094 = vadd.xlane.f32.xlu0 %v1093
          %v1095 = vpop.xlane.xlu0 %1094
          %v1096 = vrcp.pop %v1092
          %v1097 = vrcp.pop %v1095
          %v1098 = vmul.f32 %v1087, %v1096
          %v1099 = vmul.f32 %v1089, %v1097
          %v1100 = vpack.c.bf16 %v1099, %v1098
          %1101 = vrot.lane.b32.xlu0 %v544, 96
          %v1102 = vpop.permute.xlu0 %1101
          %v1105 = vsel %vm593, %v1100, 0
          %1107 = vmatprep.subr.bf16.mxu0 0
          %1108 = vmatpush1.bf16.msra.mxu0 0
          %1109 = vmatprep.subr.bf16.mxu0 0
          %1110 = vmatpush1.bf16.msra.mxu0 0
          %1111 = vmatprep.subr.bf16.mxu0 0
          %1112 = vmatpush1.bf16.msra.mxu0 0
          %1113 = vmatprep.subr.bf16.mxu0 0
          %1114 = vmatpush1.bf16.msra.mxu0 0
          %1115 = vmatprep.subr.bf16.mxu0 0
          %1116 = vmatpush1.bf16.msra.mxu0 0
          %1117 = vmatprep.subr.bf16.mxu0 0
          %1118 = vmatpush1.bf16.msra.mxu0 0
          %1119 = vmatprep.subr.bf16.mxu0 0
          %1120 = vmatpush1.bf16.msra.mxu0 0
          %1121 = vmatprep.subr.bf16.mxu0 0
          %1122 = vmatpush1.bf16.msra.mxu0 %v1102
          %1123 = vmatprep.subr.bf16.mxu0 0
          %1124 = vmatpush2.bf16.msra.mxu0 0
          %1125 = vmatprep.subr.bf16.mxu0 0
          %1126 = vmatpush2.bf16.msra.mxu0 0
          %1127 = vmatprep.subr.bf16.mxu0 0
          %1128 = vmatpush2.bf16.msra.mxu0 0
          %1129 = vmatprep.subr.bf16.mxu0 0
          %1130 = vmatpush2.bf16.msra.mxu0 0
          %1131 = vmatprep.subr.bf16.mxu0 0
          %1132 = vmatpush2.bf16.msra.mxu0 0
          %1133 = vmatprep.subr.bf16.mxu0 0
          %1134 = vmatpush2.bf16.msra.mxu0 0
          %1135 = vmatprep.subr.bf16.mxu0 0
          %1136 = vmatpush2.bf16.msra.mxu0 0
          %1137 = vmatprep.subr.bf16.mxu0 0
          %1138 = vmatpush2.bf16.msra.mxu0 0
          %1139 = vmatprep.mubr.bf16.mxu0 0
          %1140 = vmatmul.mubr.bf16.gmra.mxu0 %v1105
          %v1141 = vpop.f32.mrf.mxu0
          %v1142 = vadd.f32 0.0, %v1141
          %v1143 = vpop.f32.mrf.mxu0
          %v1144 = vpop.f32.mrf.mxu0
          %v1145 = vadd.f32 0.0, %v1144
          %v1146 = vpop.f32.mrf.mxu0
          %1147 = vdwg.mxu0
          %1148 = vrot.lane.b32.xlu0 %v542, 88
          %v1149 = vpop.permute.xlu0 %1148
          %1150 = vrot.lane.b32.xlu0 %v543, 88
          %v1151 = vpop.permute.xlu0 %1150
          %v1153 = vsel %vm545, %v1149, 0
          %v1156 = vsel %vm545, %v1151, 0
          %1158 = vmatprep.subr.bf16.mxu0 0
          %1159 = vmatpush1.bf16.xpose.msra.mxu0 0
          %1160 = vmatprep.subr.bf16.mxu0 0
          %1161 = vmatpush1.bf16.xpose.msra.mxu0 0
          %1162 = vmatprep.subr.bf16.mxu0 0
          %1163 = vmatpush1.bf16.xpose.msra.mxu0 0
          %1164 = vmatprep.subr.bf16.mxu0 0
          %1165 = vmatpush1.bf16.xpose.msra.mxu0 0
          %1166 = vmatprep.subr.bf16.mxu0 0
          %1167 = vmatpush1.bf16.xpose.msra.mxu0 0
          %1168 = vmatprep.subr.bf16.mxu0 0
          %1169 = vmatpush1.bf16.xpose.msra.mxu0 0
          %1170 = vmatprep.subr.bf16.mxu0 0
          %1171 = vmatpush1.bf16.xpose.msra.mxu0 0
          %1172 = vmatprep.subr.bf16.mxu0 0
          %1173 = vmatpush1.bf16.xpose.msra.mxu0 %v1156
          %1174 = vmatprep.subr.bf16.mxu0 0
          %1175 = vmatpush2.bf16.xpose.msra.mxu0 0
          %1176 = vmatprep.subr.bf16.mxu0 0
          %1177 = vmatpush2.bf16.xpose.msra.mxu0 0
          %1178 = vmatprep.subr.bf16.mxu0 0
          %1179 = vmatpush2.bf16.xpose.msra.mxu0 0
          %1180 = vmatprep.subr.bf16.mxu0 0
          %1181 = vmatpush2.bf16.xpose.msra.mxu0 0
          %1182 = vmatprep.subr.bf16.mxu0 0
          %1183 = vmatpush2.bf16.xpose.msra.mxu0 0
          %1184 = vmatprep.subr.bf16.mxu0 0
          %1185 = vmatpush2.bf16.xpose.msra.mxu0 0
          %1186 = vmatprep.subr.bf16.mxu0 0
          %1187 = vmatpush2.bf16.xpose.msra.mxu0 0
          %1188 = vmatprep.subr.bf16.mxu0 0
          %1189 = vmatpush2.bf16.xpose.msra.mxu0 0
          %1190 = vmatprep.mubr.bf16.mxu0 0
          %1191 = vmatmul.mubr.bf16.gmra.mxu0 %v1153
          %v1192 = vpop.f32.mrf.mxu0
          %v1193 = vadd.f32 %v312, %v1192
          %v1194 = vpop.f32.mrf.mxu0
          %v1195 = vpop.f32.mrf.mxu0
          %v1196 = vadd.f32 %v313, %v1195
          %v1197 = vpop.f32.mrf.mxu0
          %1198 = vdwg.mxu0
          %v1199 = vsel %vm593, %v1193, -inf
          %1200 = vmax.xlane.f32.xlu0 %v1199
          %v1201 = vpop.xlane.xlu0 %1200
          %v1202 = vsel %vm593, %v1196, -inf
          %1203 = vmax.xlane.f32.xlu0 %v1202
          %v1204 = vpop.xlane.xlu0 %1203
          %v1205 = vsub.f32 %v1193, %v1201
          %v1206 = vsub.f32 %v1196, %v1204
          %v1207 = vmul.f32 %v1205, 1.442695
          %v1208 = vpow.pop %v1207
          %v1209 = vmul.f32 %v1206, 1.442695
          %v1210 = vpow.pop %v1209
          %v1211 = vsel %vm593, %v1208, 0.0
          %1212 = vadd.xlane.f32.xlu0 %v1211
          %v1213 = vpop.xlane.xlu0 %1212
          %v1214 = vsel %vm593, %v1210, 0.0
          %1215 = vadd.xlane.f32.xlu0 %v1214
          %v1216 = vpop.xlane.xlu0 %1215
          %v1217 = vrcp.pop %v1213
          %v1218 = vrcp.pop %v1216
          %v1219 = vmul.f32 %v1208, %v1217
          %v1220 = vmul.f32 %v1210, %v1218
          %v1221 = vpack.c.bf16 %v1220, %v1219
          %1222 = vrot.lane.b32.xlu0 %v544, 88
          %v1223 = vpop.permute.xlu0 %1222
          %v1226 = vsel %vm593, %v1221, 0
          %1228 = vmatprep.subr.bf16.mxu0 0
          %1229 = vmatpush1.bf16.msra.mxu0 0
          %1230 = vmatprep.subr.bf16.mxu0 0
          %1231 = vmatpush1.bf16.msra.mxu0 0
          %1232 = vmatprep.subr.bf16.mxu0 0
          %1233 = vmatpush1.bf16.msra.mxu0 0
          %1234 = vmatprep.subr.bf16.mxu0 0
          %1235 = vmatpush1.bf16.msra.mxu0 0
          %1236 = vmatprep.subr.bf16.mxu0 0
          %1237 = vmatpush1.bf16.msra.mxu0 0
          %1238 = vmatprep.subr.bf16.mxu0 0
          %1239 = vmatpush1.bf16.msra.mxu0 0
          %1240 = vmatprep.subr.bf16.mxu0 0
          %1241 = vmatpush1.bf16.msra.mxu0 0
          %1242 = vmatprep.subr.bf16.mxu0 0
          %1243 = vmatpush1.bf16.msra.mxu0 %v1223
          %1244 = vmatprep.subr.bf16.mxu0 0
          %1245 = vmatpush2.bf16.msra.mxu0 0
          %1246 = vmatprep.subr.bf16.mxu0 0
          %1247 = vmatpush2.bf16.msra.mxu0 0
          %1248 = vmatprep.subr.bf16.mxu0 0
          %1249 = vmatpush2.bf16.msra.mxu0 0
          %1250 = vmatprep.subr.bf16.mxu0 0
          %1251 = vmatpush2.bf16.msra.mxu0 0
          %1252 = vmatprep.subr.bf16.mxu0 0
          %1253 = vmatpush2.bf16.msra.mxu0 0
          %1254 = vmatprep.subr.bf16.mxu0 0
          %1255 = vmatpush2.bf16.msra.mxu0 0
          %1256 = vmatprep.subr.bf16.mxu0 0
          %1257 = vmatpush2.bf16.msra.mxu0 0
          %1258 = vmatprep.subr.bf16.mxu0 0
          %1259 = vmatpush2.bf16.msra.mxu0 0
          %1260 = vmatprep.mubr.bf16.mxu0 0
          %1261 = vmatmul.mubr.bf16.gmra.mxu0 %v1226
          %v1262 = vpop.f32.mrf.mxu0
          %v1263 = vadd.f32 0.0, %v1262
          %v1264 = vpop.f32.mrf.mxu0
          %v1265 = vpop.f32.mrf.mxu0
          %v1266 = vadd.f32 0.0, %v1265
          %v1267 = vpop.f32.mrf.mxu0
          %1268 = vdwg.mxu0
          %1269 = vrot.lane.b32.xlu0 %v542, 80
          %v1270 = vpop.permute.xlu0 %1269
          %1271 = vrot.lane.b32.xlu0 %v543, 80
          %v1272 = vpop.permute.xlu0 %1271
          %v1274 = vsel %vm545, %v1270, 0
          %v1277 = vsel %vm545, %v1272, 0
          %1279 = vmatprep.subr.bf16.mxu0 0
          %1280 = vmatpush1.bf16.xpose.msra.mxu0 0
          %1281 = vmatprep.subr.bf16.mxu0 0
          %1282 = vmatpush1.bf16.xpose.msra.mxu0 0
          %1283 = vmatprep.subr.bf16.mxu0 0
          %1284 = vmatpush1.bf16.xpose.msra.mxu0 0
          %1285 = vmatprep.subr.bf16.mxu0 0
          %1286 = vmatpush1.bf16.xpose.msra.mxu0 0
          %1287 = vmatprep.subr.bf16.mxu0 0
          %1288 = vmatpush1.bf16.xpose.msra.mxu0 0
          %1289 = vmatprep.subr.bf16.mxu0 0
          %1290 = vmatpush1.bf16.xpose.msra.mxu0 0
          %1291 = vmatprep.subr.bf16.mxu0 0
          %1292 = vmatpush1.bf16.xpose.msra.mxu0 0
          %1293 = vmatprep.subr.bf16.mxu0 0
          %1294 = vmatpush1.bf16.xpose.msra.mxu0 %v1277
          %1295 = vmatprep.subr.bf16.mxu0 0
          %1296 = vmatpush2.bf16.xpose.msra.mxu0 0
          %1297 = vmatprep.subr.bf16.mxu0 0
          %1298 = vmatpush2.bf16.xpose.msra.mxu0 0
          %1299 = vmatprep.subr.bf16.mxu0 0
          %1300 = vmatpush2.bf16.xpose.msra.mxu0 0
          %1301 = vmatprep.subr.bf16.mxu0 0
          %1302 = vmatpush2.bf16.xpose.msra.mxu0 0
          %1303 = vmatprep.subr.bf16.mxu0 0
          %1304 = vmatpush2.bf16.xpose.msra.mxu0 0
          %1305 = vmatprep.subr.bf16.mxu0 0
          %1306 = vmatpush2.bf16.xpose.msra.mxu0 0
          %1307 = vmatprep.subr.bf16.mxu0 0
          %1308 = vmatpush2.bf16.xpose.msra.mxu0 0
          %1309 = vmatprep.subr.bf16.mxu0 0
          %1310 = vmatpush2.bf16.xpose.msra.mxu0 0
          %1311 = vmatprep.mubr.bf16.mxu0 0
          %1312 = vmatmul.mubr.bf16.gmra.mxu0 %v1274
          %v1313 = vpop.f32.mrf.mxu0
          %v1314 = vadd.f32 %v312, %v1313
          %v1315 = vpop.f32.mrf.mxu0
          %v1316 = vpop.f32.mrf.mxu0
          %v1317 = vadd.f32 %v313, %v1316
          %v1318 = vpop.f32.mrf.mxu0
          %1319 = vdwg.mxu0
          %v1320 = vsel %vm593, %v1314, -inf
          %1321 = vmax.xlane.f32.xlu0 %v1320
          %v1322 = vpop.xlane.xlu0 %1321
          %v1323 = vsel %vm593, %v1317, -inf
          %1324 = vmax.xlane.f32.xlu0 %v1323
          %v1325 = vpop.xlane.xlu0 %1324
          %v1326 = vsub.f32 %v1314, %v1322
          %v1327 = vsub.f32 %v1317, %v1325
          %v1328 = vmul.f32 %v1326, 1.442695
          %v1329 = vpow.pop %v1328
          %v1330 = vmul.f32 %v1327, 1.442695
          %v1331 = vpow.pop %v1330
          %v1332 = vsel %vm593, %v1329, 0.0
          %1333 = vadd.xlane.f32.xlu0 %v1332
          %v1334 = vpop.xlane.xlu0 %1333
          %v1335 = vsel %vm593, %v1331, 0.0
          %1336 = vadd.xlane.f32.xlu0 %v1335
          %v1337 = vpop.xlane.xlu0 %1336
          %v1338 = vrcp.pop %v1334
          %v1339 = vrcp.pop %v1337
          %v1340 = vmul.f32 %v1329, %v1338
          %v1341 = vmul.f32 %v1331, %v1339
          %v1342 = vpack.c.bf16 %v1341, %v1340
          %1343 = vrot.lane.b32.xlu0 %v544, 80
          %v1344 = vpop.permute.xlu0 %1343
          %v1347 = vsel %vm593, %v1342, 0
          %1349 = vmatprep.subr.bf16.mxu0 0
          %1350 = vmatpush1.bf16.msra.mxu0 0
          %1351 = vmatprep.subr.bf16.mxu0 0
          %1352 = vmatpush1.bf16.msra.mxu0 0
          %1353 = vmatprep.subr.bf16.mxu0 0
          %1354 = vmatpush1.bf16.msra.mxu0 0
          %1355 = vmatprep.subr.bf16.mxu0 0
          %1356 = vmatpush1.bf16.msra.mxu0 0
          %1357 = vmatprep.subr.bf16.mxu0 0
          %1358 = vmatpush1.bf16.msra.mxu0 0
          %1359 = vmatprep.subr.bf16.mxu0 0
          %1360 = vmatpush1.bf16.msra.mxu0 0
          %1361 = vmatprep.subr.bf16.mxu0 0
          %1362 = vmatpush1.bf16.msra.mxu0 0
          %1363 = vmatprep.subr.bf16.mxu0 0
          %1364 = vmatpush1.bf16.msra.mxu0 %v1344
          %1365 = vmatprep.subr.bf16.mxu0 0
          %1366 = vmatpush2.bf16.msra.mxu0 0
          %1367 = vmatprep.subr.bf16.mxu0 0
          %1368 = vmatpush2.bf16.msra.mxu0 0
          %1369 = vmatprep.subr.bf16.mxu0 0
          %1370 = vmatpush2.bf16.msra.mxu0 0
          %1371 = vmatprep.subr.bf16.mxu0 0
          %1372 = vmatpush2.bf16.msra.mxu0 0
          %1373 = vmatprep.subr.bf16.mxu0 0
          %1374 = vmatpush2.bf16.msra.mxu0 0
          %1375 = vmatprep.subr.bf16.mxu0 0
          %1376 = vmatpush2.bf16.msra.mxu0 0
          %1377 = vmatprep.subr.bf16.mxu0 0
          %1378 = vmatpush2.bf16.msra.mxu0 0
          %1379 = vmatprep.subr.bf16.mxu0 0
          %1380 = vmatpush2.bf16.msra.mxu0 0
          %1381 = vmatprep.mubr.bf16.mxu0 0
          %1382 = vmatmul.mubr.bf16.gmra.mxu0 %v1347
          %v1383 = vpop.f32.mrf.mxu0
          %v1384 = vadd.f32 0.0, %v1383
          %v1385 = vpop.f32.mrf.mxu0
          %v1386 = vpop.f32.mrf.mxu0
          %v1387 = vadd.f32 0.0, %v1386
          %v1388 = vpop.f32.mrf.mxu0
          %1389 = vdwg.mxu0
          %1390 = vrot.lane.b32.xlu0 %v542, 72
          %v1391 = vpop.permute.xlu0 %1390
          %1392 = vrot.lane.b32.xlu0 %v543, 72
          %v1393 = vpop.permute.xlu0 %1392
          %v1395 = vsel %vm545, %v1391, 0
          %v1398 = vsel %vm545, %v1393, 0
          %1400 = vmatprep.subr.bf16.mxu0 0
          %1401 = vmatpush1.bf16.xpose.msra.mxu0 0
          %1402 = vmatprep.subr.bf16.mxu0 0
          %1403 = vmatpush1.bf16.xpose.msra.mxu0 0
          %1404 = vmatprep.subr.bf16.mxu0 0
          %1405 = vmatpush1.bf16.xpose.msra.mxu0 0
          %1406 = vmatprep.subr.bf16.mxu0 0
          %1407 = vmatpush1.bf16.xpose.msra.mxu0 0
          %1408 = vmatprep.subr.bf16.mxu0 0
          %1409 = vmatpush1.bf16.xpose.msra.mxu0 0
          %1410 = vmatprep.subr.bf16.mxu0 0
          %1411 = vmatpush1.bf16.xpose.msra.mxu0 0
          %1412 = vmatprep.subr.bf16.mxu0 0
          %1413 = vmatpush1.bf16.xpose.msra.mxu0 0
          %1414 = vmatprep.subr.bf16.mxu0 0
          %1415 = vmatpush1.bf16.xpose.msra.mxu0 %v1398
          %1416 = vmatprep.subr.bf16.mxu0 0
          %1417 = vmatpush2.bf16.xpose.msra.mxu0 0
          %1418 = vmatprep.subr.bf16.mxu0 0
          %1419 = vmatpush2.bf16.xpose.msra.mxu0 0
          %1420 = vmatprep.subr.bf16.mxu0 0
          %1421 = vmatpush2.bf16.xpose.msra.mxu0 0
          %1422 = vmatprep.subr.bf16.mxu0 0
          %1423 = vmatpush2.bf16.xpose.msra.mxu0 0
          %1424 = vmatprep.subr.bf16.mxu0 0
          %1425 = vmatpush2.bf16.xpose.msra.mxu0 0
          %1426 = vmatprep.subr.bf16.mxu0 0
          %1427 = vmatpush2.bf16.xpose.msra.mxu0 0
          %1428 = vmatprep.subr.bf16.mxu0 0
          %1429 = vmatpush2.bf16.xpose.msra.mxu0 0
          %1430 = vmatprep.subr.bf16.mxu0 0
          %1431 = vmatpush2.bf16.xpose.msra.mxu0 0
          %1432 = vmatprep.mubr.bf16.mxu0 0
          %1433 = vmatmul.mubr.bf16.gmra.mxu0 %v1395
          %v1434 = vpop.f32.mrf.mxu0
          %v1435 = vadd.f32 %v312, %v1434
          %v1436 = vpop.f32.mrf.mxu0
          %v1437 = vpop.f32.mrf.mxu0
          %v1438 = vadd.f32 %v313, %v1437
          %v1439 = vpop.f32.mrf.mxu0
          %1440 = vdwg.mxu0
          %v1441 = vsel %vm593, %v1435, -inf
          %1442 = vmax.xlane.f32.xlu0 %v1441
          %v1443 = vpop.xlane.xlu0 %1442
          %v1444 = vsel %vm593, %v1438, -inf
          %1445 = vmax.xlane.f32.xlu0 %v1444
          %v1446 = vpop.xlane.xlu0 %1445
          %v1447 = vsub.f32 %v1435, %v1443
          %v1448 = vsub.f32 %v1438, %v1446
          %v1449 = vmul.f32 %v1447, 1.442695
          %v1450 = vpow.pop %v1449
          %v1451 = vmul.f32 %v1448, 1.442695
          %v1452 = vpow.pop %v1451
          %v1453 = vsel %vm593, %v1450, 0.0
          %1454 = vadd.xlane.f32.xlu0 %v1453
          %v1455 = vpop.xlane.xlu0 %1454
          %v1456 = vsel %vm593, %v1452, 0.0
          %1457 = vadd.xlane.f32.xlu0 %v1456
          %v1458 = vpop.xlane.xlu0 %1457
          %v1459 = vrcp.pop %v1455
          %v1460 = vrcp.pop %v1458
          %v1461 = vmul.f32 %v1450, %v1459
          %v1462 = vmul.f32 %v1452, %v1460
          %v1463 = vpack.c.bf16 %v1462, %v1461
          %1464 = vrot.lane.b32.xlu0 %v544, 72
          %v1465 = vpop.permute.xlu0 %1464
          %v1468 = vsel %vm593, %v1463, 0
          %1470 = vmatprep.subr.bf16.mxu0 0
          %1471 = vmatpush1.bf16.msra.mxu0 0
          %1472 = vmatprep.subr.bf16.mxu0 0
          %1473 = vmatpush1.bf16.msra.mxu0 0
          %1474 = vmatprep.subr.bf16.mxu0 0
          %1475 = vmatpush1.bf16.msra.mxu0 0
          %1476 = vmatprep.subr.bf16.mxu0 0
          %1477 = vmatpush1.bf16.msra.mxu0 0
          %1478 = vmatprep.subr.bf16.mxu0 0
          %1479 = vmatpush1.bf16.msra.mxu0 0
          %1480 = vmatprep.subr.bf16.mxu0 0
          %1481 = vmatpush1.bf16.msra.mxu0 0
          %1482 = vmatprep.subr.bf16.mxu0 0
          %1483 = vmatpush1.bf16.msra.mxu0 0
          %1484 = vmatprep.subr.bf16.mxu0 0
          %1485 = vmatpush1.bf16.msra.mxu0 %v1465
          %1486 = vmatprep.subr.bf16.mxu0 0
          %1487 = vmatpush2.bf16.msra.mxu0 0
          %1488 = vmatprep.subr.bf16.mxu0 0
          %1489 = vmatpush2.bf16.msra.mxu0 0
          %1490 = vmatprep.subr.bf16.mxu0 0
          %1491 = vmatpush2.bf16.msra.mxu0 0
          %1492 = vmatprep.subr.bf16.mxu0 0
          %1493 = vmatpush2.bf16.msra.mxu0 0
          %1494 = vmatprep.subr.bf16.mxu0 0
          %1495 = vmatpush2.bf16.msra.mxu0 0
          %1496 = vmatprep.subr.bf16.mxu0 0
          %1497 = vmatpush2.bf16.msra.mxu0 0
          %1498 = vmatprep.subr.bf16.mxu0 0
          %1499 = vmatpush2.bf16.msra.mxu0 0
          %1500 = vmatprep.subr.bf16.mxu0 0
          %1501 = vmatpush2.bf16.msra.mxu0 0
          %1502 = vmatprep.mubr.bf16.mxu0 0
          %1503 = vmatmul.mubr.bf16.gmra.mxu0 %v1468
          %v1504 = vpop.f32.mrf.mxu0
          %v1505 = vadd.f32 0.0, %v1504
          %v1506 = vpop.f32.mrf.mxu0
          %v1507 = vpop.f32.mrf.mxu0
          %v1508 = vadd.f32 0.0, %v1507
          %v1509 = vpop.f32.mrf.mxu0
          %1510 = vdwg.mxu0
          %1513 = vrot.lane.b32.xlu0 %v779, 8
          %v1514 = vpop.permute.xlu0 %1513
          %1515 = vrot.lane.b32.xlu0 %v782, 8
          %v1516 = vpop.permute.xlu0 %1515
          %1521 = vrot.lane.b32.xlu0 %v900, 16
          %v1522 = vpop.permute.xlu0 %1521
          %1523 = vrot.lane.b32.xlu0 %v903, 16
          %v1524 = vpop.permute.xlu0 %1523
          %1529 = vrot.lane.b32.xlu0 %v1021, 24
          %v1530 = vpop.permute.xlu0 %1529
          %1531 = vrot.lane.b32.xlu0 %v1024, 24
          %v1532 = vpop.permute.xlu0 %1531
          %1537 = vrot.lane.b32.xlu0 %v1142, 32
          %v1538 = vpop.permute.xlu0 %1537
          %1539 = vrot.lane.b32.xlu0 %v1145, 32
          %v1540 = vpop.permute.xlu0 %1539
          %1545 = vrot.lane.b32.xlu0 %v1263, 40
          %v1546 = vpop.permute.xlu0 %1545
          %1547 = vrot.lane.b32.xlu0 %v1266, 40
          %v1548 = vpop.permute.xlu0 %1547
          %1553 = vrot.lane.b32.xlu0 %v1384, 48
          %v1554 = vpop.permute.xlu0 %1553
          %1555 = vrot.lane.b32.xlu0 %v1387, 48
          %v1556 = vpop.permute.xlu0 %1555
          %1561 = vrot.lane.b32.xlu0 %v1505, 56
          %v1562 = vpop.permute.xlu0 %1561
          %1563 = vrot.lane.b32.xlu0 %v1508, 56
          %v1564 = vpop.permute.xlu0 %1563
          %v1567 = vsel %vm545, %v655, %v1514
          %v1568 = vsel %vm545, %v658, %v1516
          %v1569 = vsel %vm593, %v1567, %v1522
          %v1570 = vsel %vm593, %v1568, %v1524
          %vm1571 = vcmask 195584
          %v1572 = vsel %vm1571, %v1569, %v1530
          %v1573 = vsel %vm1571, %v1570, %v1532
          %vm1574 = vcmask 261120
          %v1575 = vsel %vm1574, %v1572, %v1538
          %v1576 = vsel %vm1574, %v1573, %v1540
          %vm1577 = vcmask 326656
          %v1578 = vsel %vm1577, %v1575, %v1546
          %v1579 = vsel %vm1577, %v1576, %v1548
          %vm1580 = vcmask 392192
          %v1581 = vsel %vm1580, %v1578, %v1554
          %v1582 = vsel %vm1580, %v1579, %v1556
          %vm1583 = vcmask 457728
          %v1584 = vsel %vm1583, %v1581, %v1562
          %v1585 = vsel %vm1583, %v1582, %v1564
          %v1586 = vpack.c.bf16 %v1585, %v1584
          %s1587 = smul.u32 %s320, 8
          %s1588 = smul.addr %s1587, 4
          %s1589 = scalar_lea.vmem %s3, %s1588
          %v1590 = vld [vmem:[%s1589] sm:$0xf]
          %v1591 = vld [vmem:[%s1589 + $0x4] sm:$0xf]
          %v1592 = vld [vmem:[%s1589 + $0x8] sm:$0xf]
          %v1593 = vld [vmem:[%s1589 + $0xc] sm:$0xf]
          %v1594 = vld [vmem:[%s1589 + $0x10] sm:$0xf]
          %v1595 = vld [vmem:[%s1589 + $0x14] sm:$0xf]
          %v1596 = vld [vmem:[%s1589 + $0x18] sm:$0xf]
          %v1597 = vld [vmem:[%s1589 + $0x1c] sm:$0xf]
          %v1598 = vlaneseq
          %v1599 = vshrl.u32 %v1598, 7
          %v1600 = vsub.s32 2, %v1599
          %v1601 = vrot.slane %v330, %v1600
          %v1610 = vunpack.c.l.b16 %v1590
          %v1611 = vunpack.c.l.b16 %v1591
          %v1612 = vunpack.c.l.b16 %v1592
          %v1613 = vunpack.c.l.b16 %v1593
          %v1614 = vunpack.c.l.b16 %v1594
          %v1615 = vunpack.c.l.b16 %v1595
          %v1616 = vunpack.c.l.b16 %v1596
          %v1617 = vunpack.c.l.b16 %v1597
          %v1618 = vpack.c.b16 %v1611, %v1610
          %v1619 = vpack.c.b16 %v1613, %v1612
          %v1620 = vpack.c.b16 %v1615, %v1614
          %v1621 = vpack.c.b16 %v1617, %v1616
          %v1627 = vsel %vm316, %v1586, 0
          %1629 = vmatprep.subr.bf16.mxu0 0
          %1630 = vmatpush1.bf16.msra.mxu0 0
          %1631 = vmatprep.subr.bf16.mxu0 0
          %1632 = vmatpush1.bf16.msra.mxu0 0
          %1633 = vmatprep.subr.bf16.mxu0 0
          %1634 = vmatpush1.bf16.msra.mxu0 0
          %1635 = vmatprep.subr.bf16.mxu0 0
          %1636 = vmatpush1.bf16.msra.mxu0 0
          %1637 = vmatprep.subr.bf16.mxu0 0
          %1638 = vmatpush1.bf16.msra.mxu0 %v1621
          %1639 = vmatprep.subr.bf16.mxu0 0
          %1640 = vmatpush1.bf16.msra.mxu0 %v1620
          %1641 = vmatprep.subr.bf16.mxu0 0
          %1642 = vmatpush1.bf16.msra.mxu0 %v1619
          %1643 = vmatprep.subr.bf16.mxu0 0
          %1644 = vmatpush1.bf16.msra.mxu0 %v1618
          %1645 = vmatprep.subr.bf16.mxu0 0
          %1646 = vmatpush2.bf16.msra.mxu0 0
          %1647 = vmatprep.subr.bf16.mxu0 0
          %1648 = vmatpush2.bf16.msra.mxu0 0
          %1649 = vmatprep.subr.bf16.mxu0 0
          %1650 = vmatpush2.bf16.msra.mxu0 0
          %1651 = vmatprep.subr.bf16.mxu0 0
          %1652 = vmatpush2.bf16.msra.mxu0 0
          %1653 = vmatprep.subr.bf16.mxu0 0
          %1654 = vmatpush2.bf16.msra.mxu0 0
          %1655 = vmatprep.subr.bf16.mxu0 0
          %1656 = vmatpush2.bf16.msra.mxu0 0
          %1657 = vmatprep.subr.bf16.mxu0 0
          %1658 = vmatpush2.bf16.msra.mxu0 0
          %1659 = vmatprep.subr.bf16.mxu0 0
          %1660 = vmatpush2.bf16.msra.mxu0 0
          %1661 = vmatprep.mubr.bf16.mxu0 0
          %1662 = vmatmul.mubr.bf16.gmra.mxu0 %v1627
          %v1663 = vpop.f32.mrf.mxu0
          %v1664 = vadd.f32 %v1601, %v1663
          %v1665 = vpop.f32.mrf.mxu0
          %v1666 = vpop.f32.mrf.mxu0
          %v1667 = vadd.f32 %v1601, %v1666
          %v1668 = vpop.f32.mrf.mxu0
          %1669 = vdwg.mxu0
          %v1670 = vadd.f32 %v325, %v1664
          %v1671 = vadd.f32 %v326, %v1667
          %v1672 = vsel %vm316, %v1670, 0.0
          %1673 = vadd.xlane.f32.xlu0 %v1672
          %v1674 = vpop.xlane.xlu0 %1673
          %v1675 = vsel %vm316, %v1671, 0.0
          %1676 = vadd.xlane.f32.xlu0 %v1675
          %v1677 = vpop.xlane.xlu0 %1676
          %v1678 = vmul.f32 %v1674, %v338
          %v1679 = vmul.f32 %v1677, %v338
          %v1680 = vsub.f32 %v1670, %v1678
          %v1681 = vsub.f32 %v1671, %v1679
          %v1682 = vmul.f32 %v1680, %v1680
          %v1683 = vmul.f32 %v1681, %v1681
          %v1684 = vsel %vm316, %v1682, 0.0
          %1685 = vadd.xlane.f32.xlu0 %v1684
          %v1686 = vpop.xlane.xlu0 %1685
          %v1687 = vsel %vm316, %v1683, 0.0
          %1688 = vadd.xlane.f32.xlu0 %v1687
          %v1689 = vpop.xlane.xlu0 %1688
          %v1690 = vmul.f32 %v1686, %v338
          %v1691 = vmul.f32 %v1689, %v338
          %v1692 = vadd.f32 %v1690, 1e-05
          %v1693 = vadd.f32 %v1691, 1e-05
          %v1694 = vrsqrt.pop %v1692
          %v1695 = vrsqrt.pop %v1693
          %v1696 = vmul.f32 %v1680, %v1694
          %v1697 = vmul.f32 %v1681, %v1695
          %v1698 = vlaneseq
          %v1699 = vshrl.u32 %v1698, 7
          %v1700 = vsub.s32 3, %v1699
          %v1701 = vrot.slane %v330, %v1700
          %v1702 = vmul.f32 %v1696, %v1701
          %v1703 = vmul.f32 %v1697, %v1701
          %v1704 = vlaneseq
          %v1705 = vshrl.u32 %v1704, 7
          %v1706 = vsub.s32 4, %v1705
          %v1707 = vrot.slane %v330, %v1706
          %v1708 = vadd.f32 %v1702, %v1707
          %v1709 = vadd.f32 %v1703, %v1707
          %v1710 = vpack.c.bf16 %v1709, %v1708
          %s1711 = smul.u32 %s320, 16
          %s1712 = smul.addr %s1711, 4
          %s1713 = scalar_lea.vmem %s4, %s1712
          %v1714 = vld [vmem:[%s1713] sm:$0xff]
          %v1715 = vld [vmem:[%s1713 + $0x8] sm:$0xff]
          %v1716 = vld [vmem:[%s1713 + $0x10] sm:$0xff]
          %v1717 = vld [vmem:[%s1713 + $0x18] sm:$0xff]
          %v1718 = vld [vmem:[%s1713 + $0x20] sm:$0xff]
          %v1719 = vld [vmem:[%s1713 + $0x28] sm:$0xff]
          %v1720 = vld [vmem:[%s1713 + $0x30] sm:$0xff]
          %v1721 = vld [vmem:[%s1713 + $0x38] sm:$0xff]
          %v1722 = vlaneseq
          %v1723 = vshrl.u32 %v1722, 7
          %v1724 = vsub.s32 6, %v1723
          %v1725 = vrot.slane %v330, %v1724
          %v1726 = vlaneseq
          %v1727 = vshrl.u32 %v1726, 7
          %v1728 = vsub.s32 6, %v1727
          %v1729 = vrot.slane %v331, %v1728
          %v1738 = vunpack.c.l.b16 %v1714
          %v1739 = vunpack.c.h.b16 %v1714
          %v1740 = vunpack.c.l.b16 %v1715
          %v1741 = vunpack.c.h.b16 %v1715
          %v1742 = vunpack.c.l.b16 %v1716
          %v1743 = vunpack.c.h.b16 %v1716
          %v1744 = vunpack.c.l.b16 %v1717
          %v1745 = vunpack.c.h.b16 %v1717
          %v1746 = vunpack.c.l.b16 %v1718
          %v1747 = vunpack.c.h.b16 %v1718
          %v1748 = vunpack.c.l.b16 %v1719
          %v1749 = vunpack.c.h.b16 %v1719
          %v1750 = vunpack.c.l.b16 %v1720
          %v1751 = vunpack.c.h.b16 %v1720
          %v1752 = vunpack.c.l.b16 %v1721
          %v1753 = vunpack.c.h.b16 %v1721
          %v1754 = vpack.c.b16 %v1740, %v1738
          %v1755 = vpack.c.b16 %v1741, %v1739
          %v1756 = vpack.c.b16 %v1744, %v1742
          %v1757 = vpack.c.b16 %v1745, %v1743
          %v1758 = vpack.c.b16 %v1748, %v1746
          %v1759 = vpack.c.b16 %v1749, %v1747
          %v1760 = vpack.c.b16 %v1752, %v1750
          %v1761 = vpack.c.b16 %v1753, %v1751
          %v1771 = vsel %vm316, %v1710, 0
          %1773 = vmatprep.subr.bf16.mxu0 0
          %1774 = vmatpush1.bf16.msra.mxu0 0
          %1775 = vmatprep.subr.bf16.mxu0 0
          %1776 = vmatpush1.bf16.msra.mxu0 0
          %1777 = vmatprep.subr.bf16.mxu0 0
          %1778 = vmatpush1.bf16.msra.mxu0 0
          %1779 = vmatprep.subr.bf16.mxu0 0
          %1780 = vmatpush1.bf16.msra.mxu0 0
          %1781 = vmatprep.subr.bf16.mxu0 %v1761
          %1782 = vmatpush1.bf16.msra.mxu0 %v1760
          %1783 = vmatprep.subr.bf16.mxu0 %v1759
          %1784 = vmatpush1.bf16.msra.mxu0 %v1758
          %1785 = vmatprep.subr.bf16.mxu0 %v1757
          %1786 = vmatpush1.bf16.msra.mxu0 %v1756
          %1787 = vmatprep.subr.bf16.mxu0 %v1755
          %1788 = vmatpush1.bf16.msra.mxu0 %v1754
          %1789 = vmatprep.subr.bf16.mxu0 0
          %1790 = vmatpush2.bf16.msra.mxu0 0
          %1791 = vmatprep.subr.bf16.mxu0 0
          %1792 = vmatpush2.bf16.msra.mxu0 0
          %1793 = vmatprep.subr.bf16.mxu0 0
          %1794 = vmatpush2.bf16.msra.mxu0 0
          %1795 = vmatprep.subr.bf16.mxu0 0
          %1796 = vmatpush2.bf16.msra.mxu0 0
          %1797 = vmatprep.subr.bf16.mxu0 0
          %1798 = vmatpush2.bf16.msra.mxu0 0
          %1799 = vmatprep.subr.bf16.mxu0 0
          %1800 = vmatpush2.bf16.msra.mxu0 0
          %1801 = vmatprep.subr.bf16.mxu0 0
          %1802 = vmatpush2.bf16.msra.mxu0 0
          %1803 = vmatprep.subr.bf16.mxu0 0
          %1804 = vmatpush2.bf16.msra.mxu0 0
          %1805 = vmatprep.mubr.bf16.mxu0 0
          %1806 = vmatmul.mubr.bf16.gmra.mxu0 %v1771
          %v1807 = vpop.f32.mrf.mxu0
          %v1808 = vadd.f32 %v1725, %v1807
          %v1809 = vpop.f32.mrf.mxu0
          %v1810 = vadd.f32 %v1729, %v1809
          %v1811 = vpop.f32.mrf.mxu0
          %v1812 = vadd.f32 %v1725, %v1811
          %v1813 = vpop.f32.mrf.mxu0
          %v1814 = vadd.f32 %v1729, %v1813
          %1815 = vdwg.mxu0
          %v1816 = vmax.f32 %v1808, 0.0
          %v1817 = vmax.f32 %v1810, 0.0
          %v1818 = vmax.f32 %v1812, 0.0
          %v1819 = vmax.f32 %v1814, 0.0
          %v1820 = vpack.c.bf16 %v1818, %v1816
          %v1821 = vpack.c.bf16 %v1819, %v1817
          %s1822 = smul.u32 %s320, 32
          %s1823 = smul.addr %s1822, 4
          %s1824 = scalar_lea.vmem %s5, %s1823
          %v1825 = vld [vmem:[%s1824] sm:$0xf]
          %v1826 = vld [vmem:[%s1824 + $0x4] sm:$0xf]
          %v1827 = vld [vmem:[%s1824 + $0x8] sm:$0xf]
          %v1828 = vld [vmem:[%s1824 + $0xc] sm:$0xf]
          %v1829 = vld [vmem:[%s1824 + $0x10] sm:$0xf]
          %v1830 = vld [vmem:[%s1824 + $0x14] sm:$0xf]
          %v1831 = vld [vmem:[%s1824 + $0x18] sm:$0xf]
          %v1832 = vld [vmem:[%s1824 + $0x1c] sm:$0xf]
          %v1833 = vld [vmem:[%s1824 + $0x20] sm:$0xf]
          %v1834 = vld [vmem:[%s1824 + $0x24] sm:$0xf]
          %v1835 = vld [vmem:[%s1824 + $0x28] sm:$0xf]
          %v1836 = vld [vmem:[%s1824 + $0x2c] sm:$0xf]
          %v1837 = vld [vmem:[%s1824 + $0x30] sm:$0xf]
          %v1838 = vld [vmem:[%s1824 + $0x34] sm:$0xf]
          %v1839 = vld [vmem:[%s1824 + $0x38] sm:$0xf]
          %v1840 = vld [vmem:[%s1824 + $0x3c] sm:$0xf]
          %v1841 = vld [vmem:[%s1824 + $0x40] sm:$0xf]
          %v1842 = vld [vmem:[%s1824 + $0x44] sm:$0xf]
          %v1843 = vld [vmem:[%s1824 + $0x48] sm:$0xf]
          %v1844 = vld [vmem:[%s1824 + $0x4c] sm:$0xf]
          %v1845 = vld [vmem:[%s1824 + $0x50] sm:$0xf]
          %v1846 = vld [vmem:[%s1824 + $0x54] sm:$0xf]
          %v1847 = vld [vmem:[%s1824 + $0x58] sm:$0xf]
          %v1848 = vld [vmem:[%s1824 + $0x5c] sm:$0xf]
          %v1849 = vld [vmem:[%s1824 + $0x60] sm:$0xf]
          %v1850 = vld [vmem:[%s1824 + $0x64] sm:$0xf]
          %v1851 = vld [vmem:[%s1824 + $0x68] sm:$0xf]
          %v1852 = vld [vmem:[%s1824 + $0x6c] sm:$0xf]
          %v1853 = vld [vmem:[%s1824 + $0x70] sm:$0xf]
          %v1854 = vld [vmem:[%s1824 + $0x74] sm:$0xf]
          %v1855 = vld [vmem:[%s1824 + $0x78] sm:$0xf]
          %v1856 = vld [vmem:[%s1824 + $0x7c] sm:$0xf]
          %v1857 = vlaneseq
          %v1858 = vshrl.u32 %v1857, 7
          %v1859 = vsub.s32 5, %v1858
          %v1860 = vrot.slane %v330, %v1859
          %v1893 = vunpack.c.l.b16 %v1825
          %v1894 = vunpack.c.l.b16 %v1826
          %v1895 = vunpack.c.l.b16 %v1827
          %v1896 = vunpack.c.l.b16 %v1828
          %v1897 = vunpack.c.l.b16 %v1829
          %v1898 = vunpack.c.l.b16 %v1830
          %v1899 = vunpack.c.l.b16 %v1831
          %v1900 = vunpack.c.l.b16 %v1832
          %v1901 = vunpack.c.l.b16 %v1833
          %v1902 = vunpack.c.l.b16 %v1834
          %v1903 = vunpack.c.l.b16 %v1835
          %v1904 = vunpack.c.l.b16 %v1836
          %v1905 = vunpack.c.l.b16 %v1837
          %v1906 = vunpack.c.l.b16 %v1838
          %v1907 = vunpack.c.l.b16 %v1839
          %v1908 = vunpack.c.l.b16 %v1840
          %v1909 = vunpack.c.l.b16 %v1841
          %v1910 = vunpack.c.l.b16 %v1842
          %v1911 = vunpack.c.l.b16 %v1843
          %v1912 = vunpack.c.l.b16 %v1844
          %v1913 = vunpack.c.l.b16 %v1845
          %v1914 = vunpack.c.l.b16 %v1846
          %v1915 = vunpack.c.l.b16 %v1847
          %v1916 = vunpack.c.l.b16 %v1848
          %v1917 = vunpack.c.l.b16 %v1849
          %v1918 = vunpack.c.l.b16 %v1850
          %v1919 = vunpack.c.l.b16 %v1851
          %v1920 = vunpack.c.l.b16 %v1852
          %v1921 = vunpack.c.l.b16 %v1853
          %v1922 = vunpack.c.l.b16 %v1854
          %v1923 = vunpack.c.l.b16 %v1855
          %v1924 = vunpack.c.l.b16 %v1856
          %v1925 = vpack.c.b16 %v1894, %v1893
          %v1926 = vpack.c.b16 %v1896, %v1895
          %v1927 = vpack.c.b16 %v1898, %v1897
          %v1928 = vpack.c.b16 %v1900, %v1899
          %v1929 = vpack.c.b16 %v1902, %v1901
          %v1930 = vpack.c.b16 %v1904, %v1903
          %v1931 = vpack.c.b16 %v1906, %v1905
          %v1932 = vpack.c.b16 %v1908, %v1907
          %v1933 = vpack.c.b16 %v1910, %v1909
          %v1934 = vpack.c.b16 %v1912, %v1911
          %v1935 = vpack.c.b16 %v1914, %v1913
          %v1936 = vpack.c.b16 %v1916, %v1915
          %v1937 = vpack.c.b16 %v1918, %v1917
          %v1938 = vpack.c.b16 %v1920, %v1919
          %v1939 = vpack.c.b16 %v1922, %v1921
          %v1940 = vpack.c.b16 %v1924, %v1923
          %1957 = vmatprep.subr.bf16.mxu0 0
          %1958 = vmatpush1.bf16.msra.mxu0 %v1932
          %1959 = vmatprep.subr.bf16.mxu0 0
          %1960 = vmatpush1.bf16.msra.mxu0 %v1931
          %1961 = vmatprep.subr.bf16.mxu0 0
          %1962 = vmatpush1.bf16.msra.mxu0 %v1930
          %1963 = vmatprep.subr.bf16.mxu0 0
          %1964 = vmatpush1.bf16.msra.mxu0 %v1929
          %1965 = vmatprep.subr.bf16.mxu0 0
          %1966 = vmatpush1.bf16.msra.mxu0 %v1928
          %1967 = vmatprep.subr.bf16.mxu0 0
          %1968 = vmatpush1.bf16.msra.mxu0 %v1927
          %1969 = vmatprep.subr.bf16.mxu0 0
          %1970 = vmatpush1.bf16.msra.mxu0 %v1926
          %1971 = vmatprep.subr.bf16.mxu0 0
          %1972 = vmatpush1.bf16.msra.mxu0 %v1925
          %1973 = vmatprep.subr.bf16.mxu0 0
          %1974 = vmatpush2.bf16.msra.mxu0 %v1940
          %1975 = vmatprep.subr.bf16.mxu0 0
          %1976 = vmatpush2.bf16.msra.mxu0 %v1939
          %1977 = vmatprep.subr.bf16.mxu0 0
          %1978 = vmatpush2.bf16.msra.mxu0 %v1938
          %1979 = vmatprep.subr.bf16.mxu0 0
          %1980 = vmatpush2.bf16.msra.mxu0 %v1937
          %1981 = vmatprep.subr.bf16.mxu0 0
          %1982 = vmatpush2.bf16.msra.mxu0 %v1936
          %1983 = vmatprep.subr.bf16.mxu0 0
          %1984 = vmatpush2.bf16.msra.mxu0 %v1935
          %1985 = vmatprep.subr.bf16.mxu0 0
          %1986 = vmatpush2.bf16.msra.mxu0 %v1934
          %1987 = vmatprep.subr.bf16.mxu0 0
          %1988 = vmatpush2.bf16.msra.mxu0 %v1933
          %1989 = vmatprep.mubr.bf16.mxu0 %v1821
          %1990 = vmatmul.mubr.bf16.gmra.mxu0 %v1820
          %v1991 = vpop.f32.mrf.mxu0
          %v1992 = vadd.f32 %v1860, %v1991
          %v1993 = vpop.f32.mrf.mxu0
          %v1994 = vpop.f32.mrf.mxu0
          %v1995 = vadd.f32 %v1860, %v1994
          %v1996 = vpop.f32.mrf.mxu0
          %1997 = vdwg.mxu0
          %v1998 = vadd.f32 %v1670, %v1992
          %v1999 = vadd.f32 %v1671, %v1995
          %2000 = vst.msk [vmem:[#allocation2] sm:$0xff] %vm316, %v1998
          %2001 = vst.msk [vmem:[#allocation2 + $0x8] sm:$0xff] %vm316, %v1999
        $region57: #{heart_gpt_forward.1} parent=51 // loop_footer
          %s324 = sadd.s32 1, %s320
        $region58: #{heart_gpt_forward.1} parent=51 // loop_footer_branch
          %319 = sbr.rel target = $region54
        $region59: #{heart_gpt_forward.1} parent=51 // loop_exit
          _
        %v2002 = vld [vmem:[#allocation2] sm:$0xff]
        %v2003 = vld [vmem:[#allocation2 + $0x8] sm:$0xff]
        %v2004 = vld [vmem:[%s6] sm:$0xff]
        %v2005 = vsel %vm316, %v2002, 0.0
        %2006 = vadd.xlane.f32.xlu0 %v2005
        %v2007 = vpop.xlane.xlu0 %2006
        %v2008 = vsel %vm316, %v2003, 0.0
        %2009 = vadd.xlane.f32.xlu0 %v2008
        %v2010 = vpop.xlane.xlu0 %2009
        %v2011 = vrcp.pop 64.0
        %v2012 = vmul.f32 %v2007, %v2011
        %v2013 = vmul.f32 %v2010, %v2011
        %v2014 = vsub.f32 %v2002, %v2012
        %v2015 = vsub.f32 %v2003, %v2013
        %v2016 = vmul.f32 %v2014, %v2014
        %v2017 = vmul.f32 %v2015, %v2015
        %v2018 = vsel %vm316, %v2016, 0.0
        %2019 = vadd.xlane.f32.xlu0 %v2018
        %v2020 = vpop.xlane.xlu0 %2019
        %v2021 = vsel %vm316, %v2017, 0.0
        %2022 = vadd.xlane.f32.xlu0 %v2021
        %v2023 = vpop.xlane.xlu0 %2022
        %v2024 = vmul.f32 %v2020, %v2011
        %v2025 = vmul.f32 %v2023, %v2011
        %v2026 = vadd.f32 %v2024, 1e-05
        %v2027 = vadd.f32 %v2025, 1e-05
        %v2028 = vrsqrt.pop %v2026
        %v2029 = vrsqrt.pop %v2027
        %v2030 = vmul.f32 %v2014, %v2028
        %v2031 = vmul.f32 %v2015, %v2029
        %v2032 = vlaneseq
        %v2033 = vshrl.u32 %v2032, 7
        %v2034 = vsub.s32 0, %v2033
        %v2035 = vrot.slane %v2004, %v2034
        %v2036 = vmul.f32 %v2030, %v2035
        %v2037 = vmul.f32 %v2031, %v2035
        %v2038 = vlaneseq
        %v2039 = vshrl.u32 %v2038, 7
        %v2040 = vsub.s32 1, %v2039
        %v2041 = vrot.slane %v2004, %v2040
        %v2042 = vadd.f32 %v2036, %v2041
        %v2043 = vadd.f32 %v2037, %v2041
        %v2044 = vpack.c.bf16 %v2043, %v2042
        %v2045 = vld [vmem:[%s7] sm:$0xf]
        %v2046 = vld [vmem:[%s7 + $0x4] sm:$0xf]
        %v2047 = vld [vmem:[%s7 + $0x8] sm:$0xf]
        %v2048 = vld [vmem:[%s7 + $0xc] sm:$0xf]
        %v2049 = vld [vmem:[%s7 + $0x10] sm:$0xf]
        %v2050 = vld [vmem:[%s7 + $0x14] sm:$0xf]
        %v2051 = vld [vmem:[%s7 + $0x18] sm:$0xf]
        %v2052 = vld [vmem:[%s7 + $0x1c] sm:$0xf]
        %v2053 = vlaneseq
        %v2054 = vshrl.u32 %v2053, 7
        %v2055 = vsub.s32 2, %v2054
        %v2056 = vrot.slane %v2004, %v2055
        %v2065 = vunpack.c.l.b16 %v2045
        %v2066 = vunpack.c.l.b16 %v2046
        %v2067 = vunpack.c.l.b16 %v2047
        %v2068 = vunpack.c.l.b16 %v2048
        %v2069 = vunpack.c.l.b16 %v2049
        %v2070 = vunpack.c.l.b16 %v2050
        %v2071 = vunpack.c.l.b16 %v2051
        %v2072 = vunpack.c.l.b16 %v2052
        %v2073 = vpack.c.b16 %v2066, %v2065
        %v2074 = vpack.c.b16 %v2068, %v2067
        %v2075 = vpack.c.b16 %v2070, %v2069
        %v2076 = vpack.c.b16 %v2072, %v2071
        %v2082 = vsel %vm316, %v2044, 0
        %2084 = vmatprep.subr.bf16.mxu0 0
        %2085 = vmatpush1.bf16.msra.mxu0 0
        %2086 = vmatprep.subr.bf16.mxu0 0
        %2087 = vmatpush1.bf16.msra.mxu0 0
        %2088 = vmatprep.subr.bf16.mxu0 0
        %2089 = vmatpush1.bf16.msra.mxu0 0
        %2090 = vmatprep.subr.bf16.mxu0 0
        %2091 = vmatpush1.bf16.msra.mxu0 0
        %2092 = vmatprep.subr.bf16.mxu0 0
        %2093 = vmatpush1.bf16.msra.mxu0 %v2076
        %2094 = vmatprep.subr.bf16.mxu0 0
        %2095 = vmatpush1.bf16.msra.mxu0 %v2075
        %2096 = vmatprep.subr.bf16.mxu0 0
        %2097 = vmatpush1.bf16.msra.mxu0 %v2074
        %2098 = vmatprep.subr.bf16.mxu0 0
        %2099 = vmatpush1.bf16.msra.mxu0 %v2073
        %2100 = vmatprep.subr.bf16.mxu0 0
        %2101 = vmatpush2.bf16.msra.mxu0 0
        %2102 = vmatprep.subr.bf16.mxu0 0
        %2103 = vmatpush2.bf16.msra.mxu0 0
        %2104 = vmatprep.subr.bf16.mxu0 0
        %2105 = vmatpush2.bf16.msra.mxu0 0
        %2106 = vmatprep.subr.bf16.mxu0 0
        %2107 = vmatpush2.bf16.msra.mxu0 0
        %2108 = vmatprep.subr.bf16.mxu0 0
        %2109 = vmatpush2.bf16.msra.mxu0 0
        %2110 = vmatprep.subr.bf16.mxu0 0
        %2111 = vmatpush2.bf16.msra.mxu0 0
        %2112 = vmatprep.subr.bf16.mxu0 0
        %2113 = vmatpush2.bf16.msra.mxu0 0
        %2114 = vmatprep.subr.bf16.mxu0 0
        %2115 = vmatpush2.bf16.msra.mxu0 0
        %2116 = vmatprep.mubr.bf16.mxu0 0
        %2117 = vmatmul.mubr.bf16.gmra.mxu0 %v2082
        %v2118 = vpop.f32.mrf.mxu0
        %v2119 = vadd.f32 %v2056, %v2118
        %v2120 = vpop.f32.mrf.mxu0
        %v2121 = vpop.f32.mrf.mxu0
        %v2122 = vadd.f32 %v2056, %v2121
        %v2123 = vpop.f32.mrf.mxu0
        %2124 = vdwg.mxu0
        %2125 = vst [vmem:[%s298] sm:$0xff] %v2119
        %2126 = vst [vmem:[%s298 + $0x8] sm:$0xff] %v2122
        %s2127 = sand.u32 %s203, 1
        %s2128 = scalar_lea.sflag [#allocation4], %s2127
        %s2129 = sand.u32 %s203, 1
        %s2130 = smul.addr %s2129, 16
        %s2131 = scalar_lea.vmem [#allocation3], %s2130
        // Predicated region
        $region60: #{heart_gpt_forward.1} parent=51 // pred_check
          %p2132 = pneg %p213
        $region61: #{heart_gpt_forward.1} parent=51 // pred_check_branch
          %2134 = sbr.rel (%p2132) target = $region63
        $region62: #{heart_gpt_forward.1} parent=51 // pred_region
          %s2136 = ssub.s32 256, 256
          %2137 = vsyncadd %s2128, %s2136
          %s2138 = smul.addr %s22, 2
          %s2139 = smul.addr %s2138, 128
          %s2140 = scalar_lea.hbm %s8, %s2139
          %s2141 = sshll.u32 %s2131, 4
          %s2142 = int_to_ptr.vmem [resolvable:$true] %s2141
          %2147 = dma.vmem_to_hbm [thread:$0]  %s2142, 256, %s2140, %s2128, 128, 128, 8
        $region63: #{heart_gpt_forward.1} parent=51 // pred_fallthru
          _
      $region52: #{heart_gpt_forward.1} parent=5 // pred_fallthru
        _
      %p2148 = scmp.le.s32.totalorder 2, %s17
      // Predicated region
      $region64: #{heart_gpt_forward.1} parent=5 // pred_check
        %p2149 = pneg %p2148
      $region65: #{heart_gpt_forward.1} parent=5 // pred_check_branch
        %2151 = sbr.rel (%p2149) target = $region67
      $region66: #{heart_gpt_forward.1} parent=5 // pred_region
        %s2152 = ssub.s32 %s17, 2
        // Predicated region
        $region68: #{heart_gpt_forward.1} parent=66 // pred_check
          %p2153 = pneg %p219
        $region69: #{heart_gpt_forward.1} parent=66 // pred_check_branch
          %2155 = sbr.rel (%p2153) target = $region71
        $region70: #{heart_gpt_forward.1} parent=66 // pred_region
          %s2156 = sand.u32 %s204, 1
          %s2157 = scalar_lea.sflag [#allocation4], %s2156
          %s2158 = sand.u32 %s204, 1
          %s2159 = smul.addr %s2158, 16
          %s2160 = scalar_lea.vmem [#allocation3], %s2159
          %2161 = dma.done %s2157, 256
        $region71: #{heart_gpt_forward.1} parent=66 // pred_fallthru
          _
      $region67: #{heart_gpt_forward.1} parent=5 // pred_fallthru
        _
    $region6: #{heart_gpt_forward.1} parent=1 // loop_footer
      %s21 = sadd.s32 1, %s17
    $region7: #{heart_gpt_forward.1} parent=1 // loop_footer_branch
      %16 = sbr.rel target = $region3
    $region8: #{heart_gpt_forward.1} parent=1 // loop_exit
      _
    %2162 = vsyncpa [#allocation4], 1
    %s2163 = scalar_lea.sflag [#allocation4], 1
    %2164 = vsyncpa %s2163, 1

</llo_original>
